<compile_context>
chip_gen: v6e
topology: v6e:2x2x1
jax: 0.10.0
libtpu: 0.0.40
codegen_flags: <defaults>
</compile_context>

<pallas_src>
import functools

import jax
import jax.numpy as jnp
from jax import lax
from jax.experimental import pallas as pl
from jax.experimental.pallas import tpu as pltpu

BN_EPS = 1e-5


def _round_up(x, m):
    return ((x + m - 1) // m) * m


def prepare_conv_weight(w):
    """One-time parameter prep (hoisted out of the per-call path):
    (Cout, Cin, 1, 1) f32 -> (Cout, Cin) bf16 for the bf16-native MXU."""
    cout, cin = w.shape[0], w.shape[1]
    return w.reshape(cout, cin).astype(jnp.bfloat16)


def _fused_kernel(scale_ref, x_ref, w_ref, gamma_ref, beta_ref, res_ref, out_ref,
                  xs_ref, *, bn_eps, inv_m):
    # scale_ref: (Cin, 1)   f32   grid-resident
    # x_ref:     (Cin, M)   f32   grid-resident (M = N*H*W, never tiled -> exact BN)
    # w_ref:     (tn, Cin)  bf16  current Cout tile of the conv weight
    # gamma_ref: (tn, 1)    f32
    # beta_ref:  (tn, 1)    f32
    # res_ref:   (tn, M)    f32
    # out_ref:   (tn, M)    f32
    # xs_ref:    (Cin, M)   bf16  scratch, persists across grid steps

    # x325: per-input-channel scale + f32->bf16 cast, computed once per core
    # (inner grid axis is sequential per core, so j==0 always runs first).
    @pl.when(pl.program_id(1) == 0)
    def _fill():
        xs_ref[...] = (x_ref[...] * scale_ref[...]).astype(jnp.bfloat16)

    # x326: 1x1 conv == (tn, Cin) @ (Cin, M) — canonical MXU form, no transposes.
    y = lax.dot_general(
        w_ref[...], xs_ref[...],
        dimension_numbers=(((1,), (0,)), ((), ())),
        preferred_element_type=jnp.float32)                     # (tn, M) f32

    # x327: training-mode BatchNorm2d, single-pass biased batch statistics
    # (exact: every output channel sees all M rows), folded into y*a + b.
    s1 = jnp.sum(y, axis=1, keepdims=True)                      # (tn, 1)
    s2 = jnp.sum(y * y, axis=1, keepdims=True)                  # (tn, 1)
    mean = s1 * inv_m
    var = jnp.maximum(s2 * inv_m - mean * mean, 0.0)            # guard cancellation
    a = lax.rsqrt(var + bn_eps) * gamma_ref[...]                # (tn, 1)
    b = beta_ref[...] - mean * a                                # (tn, 1)

    # x328
    out_ref[...] = res_ref[...] + (y * a + b)


def fused_forward(x324, x319, x313, w_bf16, gamma, beta, *, tn=512, bn_eps=BN_EPS):
    """x324: (N,Cin,1,1); x319/x313: (N,C,H,W); w_bf16: prepared (Cout,Cin) bf16;
    gamma/beta: (Cout,)."""
    # TODO(synk): BatchNorm2d running_mean/running_var momentum updates are module
    # state side-effects; the returned tensor does not depend on them, so they are
    # not computed here.
    N, Cin, H, W = x319.shape
    HW = H * W
    # Defensive no-ops if the caller already passed a prepared (Cout, Cin) bf16 weight.
    Cout = w_bf16.shape[0]
    w2 = w_bf16.reshape(Cout, Cin).astype(jnp.bfloat16)

    if N == 1:
        # Channel-major layout via free reshapes only (no NCHW<->NHWC transposes).
        M = HW
        x2 = x319.reshape(Cin, M)
        scale2 = x324.reshape(Cin, 1)
        res2 = x313.reshape(Cout, M)
    else:
        # TODO(synk): the module runs with batch=1; N>1 falls back to wrapper-side
        # pre-scaling + channel-major transposes (still exact, BN stats untiled).
        M = N * HW
        x2 = jnp.transpose(x324 * x319, (1, 0, 2, 3)).reshape(Cin, M)
        scale2 = jnp.ones((Cin, 1), x319.dtype)
        res2 = jnp.transpose(x313, (1, 0, 2, 3)).reshape(Cout, M)

    gamma2 = gamma.reshape(Cout, 1).astype(jnp.float32)
    beta2 = beta.reshape(Cout, 1).astype(jnp.float32)

    # Cout tile: multiple of 8 (sublane-aligned); no padding — last tile may be
    # partial (masked boundary writes).  Split the tiles 2-ways on the outer axis
    # when the count is even so v7x megacore gets a balanced 50/50 split.
    tn = min(tn, _round_up(Cout, 8))
    n_tiles = pl.cdiv(Cout, tn)
    outer = 2 if (n_tiles % 2 == 0 and n_tiles >= 2) else 1
    inner = n_tiles // outer
    grid = (outer, inner)

    def tile_map(i, j, inner=inner):
        return (i * inner + j, 0)

    cost = pl.CostEstimate(
        flops=2 * M * Cin * Cout + 10 * M * Cout + 2 * M * Cin,
        transcendentals=Cout,
        bytes_accessed=(x2.size * 4 + scale2.size * 4 + w2.size * 2
                        + gamma2.size * 4 + beta2.size * 4
                        + res2.size * 4 + Cout * M * 4),
    )

    out2 = pl.pallas_call(
        functools.partial(_fused_kernel, bn_eps=bn_eps, inv_m=1.0 / M),
        out_shape=jax.ShapeDtypeStruct((Cout, M), jnp.float32),
        grid=grid,
        in_specs=[
            pl.BlockSpec((Cin, 1), lambda i, j: (0, 0)),   # scale (grid-resident)
            pl.BlockSpec((Cin, M), lambda i, j: (0, 0)),   # x319  (grid-resident)
            pl.BlockSpec((tn, Cin), tile_map),             # weight Cout tile
            pl.BlockSpec((tn, 1), tile_map),               # gamma tile
            pl.BlockSpec((tn, 1), tile_map),               # beta tile
            pl.BlockSpec((tn, M), tile_map),               # residual tile
        ],
        out_specs=pl.BlockSpec((tn, M), tile_map),
        scratch_shapes=[pltpu.VMEM((Cin, M), jnp.bfloat16)],   # hoisted x325 in bf16
        compiler_params=pltpu.CompilerParams(
            dimension_semantics=("parallel", "arbitrary"),
            vmem_limit_bytes=32 * 1024 * 1024,
        ),
        cost_estimate=cost,
    )(scale2, x2, w2, gamma2, beta2, res2)

    if N == 1:
        return out2.reshape(1, Cout, H, W)
    return jnp.transpose(out2.reshape(Cout, N, H, W), (1, 0, 2, 3))


def reference_forward(x324, x319, x313, w, gamma, beta, bn_eps=BN_EPS):
    """Pure-JAX f32 reference mirroring PyTorch (training-mode BN, biased variance)."""
    x325 = x324 * x319                                        # (N,C,H,W)
    N, C, H, W = x325.shape
    xr = jnp.transpose(x325, (0, 2, 3, 1)).reshape(-1, C)
    y = xr @ w.reshape(w.shape[0], C).T
    m = jnp.mean(y, axis=0, keepdims=True)
    v = jnp.mean((y - m) ** 2, axis=0, keepdims=True)
    yn = (y - m) / jnp.sqrt(v + bn_eps) * gamma[None, :] + beta[None, :]
    x327 = jnp.transpose(yn.reshape(N, H, W, -1), (0, 3, 1, 2))
    return x313 + x327


if __name__ == "__main__":
    # Small shapes consistent with the module (original: N=1, C=2904, H=W=14).
    # C=448 with tn=128 -> 4 Cout tiles, grid (2, 2): exercises the megacore-style
    # outer split, the scratch reuse across inner steps, and a partial last tile.
    N, C, H, W = 1, 448, 8, 8

    key = jax.random.PRNGKey(0)
    k1, k2, k3, k4, k5, k6 = jax.random.split(key, 6)

    x324 = jax.random.normal(k1, (N, C, 1, 1), dtype=jnp.float32)
    x319 = jax.random.normal(k2, (N, C, H, W), dtype=jnp.float32)
    x313 = jax.random.normal(k3, (N, C, H, W), dtype=jnp.float32)

    # Conv2d(C, C, 1x1, bias=False) weight; BatchNorm affine params.
    w = jax.random.normal(k4, (C, C, 1, 1), dtype=jnp.float32) * 0.05
    gamma = jax.random.uniform(k5, (C,), minval=0.5, maxval=1.5, dtype=jnp.float32)
    beta = jax.random.normal(k6, (C,), dtype=jnp.float32) * 0.1

    # One-time parameter prep (hoisted out of the per-call path).
    w_bf16 = prepare_conv_weight(w)

    out = fused_forward(x324, x319, x313, w_bf16, gamma, beta, tn=128)
    out = jax.block_until_ready(out)

    ref = reference_forward(x324, x319, x313, w, gamma, beta)
    assert out.shape == (N, C, H, W)
    # bf16 matmul operands (f32 accumulation) -> modestly looser tolerance than f32.
    max_diff = float(jnp.max(jnp.abs(out - ref)))
    assert jnp.allclose(out, ref, atol=5e-2, rtol=5e-2), \
        f"mismatch vs reference, max|diff|={max_diff}"

    print("KERNEL_OK")
</pallas_src>

<mosaic_0001>
module attributes {stable_mosaic.version = 11 : i64} {
  func.func @_fused_kernel(%arg0: i32, %arg1: i32, %arg2: memref<448x1xf32, #tpu.memory_space<vmem>>, %arg3: memref<448x64xf32, #tpu.memory_space<vmem>>, %arg4: memref<128x448xbf16, #tpu.memory_space<vmem>>, %arg5: memref<128x1xf32, #tpu.memory_space<vmem>>, %arg6: memref<128x1xf32, #tpu.memory_space<vmem>>, %arg7: memref<128x64xf32, #tpu.memory_space<vmem>>, %arg8: memref<128x64xf32, #tpu.memory_space<vmem>>, %arg9: memref<448x64xbf16, #tpu.memory_space<vmem>>) attributes {dimension_semantics = [#tpu.dimension_semantics<parallel>, #tpu.dimension_semantics<arbitrary>], iteration_bounds = array<i64: 2, 2>, scalar_prefetch = 0 : i64, scratch_operands = 1 : i64, tpu.core_type = #tpu.core_type<tc>, window_params = [{pipeline_mode = #tpu.pipeline_mode<synchronous>, transform_indices = @transform_0, window_bounds = array<i64: 448, 1>}, {pipeline_mode = #tpu.pipeline_mode<synchronous>, transform_indices = @transform_1, window_bounds = array<i64: 448, 64>}, {transform_indices = @transform_2, window_bounds = array<i64: 128, 448>}, {transform_indices = @transform_3, window_bounds = array<i64: 128, 1>}, {transform_indices = @transform_4, window_bounds = array<i64: 128, 1>}, {transform_indices = @transform_5, window_bounds = array<i64: 128, 64>}, {transform_indices = @transform_6, window_bounds = array<i64: 128, 64>}]} {
    %c0_i32 = arith.constant 0 : i32
    %0 = arith.cmpi eq, %arg1, %c0_i32 : i32
    %1 = arith.extui %0 : i1 to i32
    %c0_i32_0 = arith.constant 0 : i32
    %2 = arith.cmpi ne, %1, %c0_i32_0 : i32
    scf.if %2 {
      %c0_18 = arith.constant 0 : index
      %c0_19 = arith.constant 0 : index
      %34 = vector.load %arg3[%c0_18, %c0_19] : memref<448x64xf32, #tpu.memory_space<vmem>>, vector<448x64xf32>
      %c0_20 = arith.constant 0 : index
      %c0_21 = arith.constant 0 : index
      %35 = vector.load %arg2[%c0_20, %c0_21] : memref<448x1xf32, #tpu.memory_space<vmem>>, vector<448x1xf32>
      %36 = vector.broadcast %35 : vector<448x1xf32> to vector<448x64xf32>
      %37 = arith.mulf %34, %36 : vector<448x64xf32>
      %38 = arith.truncf %37 : vector<448x64xf32> to vector<448x64xbf16>
      %c0_22 = arith.constant 0 : index
      %c0_23 = arith.constant 0 : index
      %39 = vector.load %arg9[%c0_22, %c0_23] : memref<448x64xbf16, #tpu.memory_space<vmem>>, vector<448x64xbf16>
      tpu.vector_store %arg9[%c0_22, %c0_23], %38 {strides = array<i32>} : memref<448x64xbf16, #tpu.memory_space<vmem>>, vector<448x64xbf16>,
    } else {
    }
    %c0 = arith.constant 0 : index
    %c0_1 = arith.constant 0 : index
    %3 = vector.load %arg4[%c0, %c0_1] : memref<128x448xbf16, #tpu.memory_space<vmem>>, vector<128x448xbf16>
    %c0_2 = arith.constant 0 : index
    %c0_3 = arith.constant 0 : index
    %4 = vector.load %arg9[%c0_2, %c0_3] : memref<448x64xbf16, #tpu.memory_space<vmem>>, vector<448x64xbf16>
    %cst = arith.constant dense<0.000000e+00> : vector<128x64xf32>
    %5 = tpu.matmul %3, %4, %cst {dimension_numbers = #tpu.dot_dimension_numbers<[1], [0], [0], [1], [0, 0, 1, 1], [], []>} : vector<128x448xbf16>, vector<448x64xbf16>, vector<128x64xf32> -> vector<128x64xf32>
    %cst_4 = arith.constant dense<0.000000e+00> : vector<128xf32>
    %6 = vector.multi_reduction <add>, %5, %cst_4 [1] : vector<128x64xf32> to vector<128xf32>
    %7 = vector.shape_cast %6 : vector<128xf32> to vector<128x1xf32>
    %8 = arith.mulf %5, %5 : vector<128x64xf32>
    %cst_5 = arith.constant dense<0.000000e+00> : vector<128xf32>
    %9 = vector.multi_reduction <add>, %8, %cst_5 [1] : vector<128x64xf32> to vector<128xf32>
    %10 = vector.shape_cast %9 : vector<128xf32> to vector<128x1xf32>
    %cst_6 = arith.constant 1.562500e-02 : f32
    %11 = vector.broadcast %cst_6 : f32 to vector<128x1xf32>
    %12 = arith.mulf %7, %11 : vector<128x1xf32>
    %cst_7 = arith.constant 1.562500e-02 : f32
    %13 = vector.broadcast %cst_7 : f32 to vector<128x1xf32>
    %14 = arith.mulf %10, %13 : vector<128x1xf32>
    %15 = arith.mulf %12, %12 : vector<128x1xf32>
    %16 = arith.subf %14, %15 : vector<128x1xf32>
    %cst_8 = arith.constant 0.000000e+00 : f32
    %17 = vector.broadcast %cst_8 : f32 to vector<128x1xf32>
    %18 = arith.maximumf %16, %17 : vector<128x1xf32>
    %cst_9 = arith.constant 9.99999974E-6 : f32
    %19 = vector.broadcast %cst_9 : f32 to vector<128x1xf32>
    %20 = arith.addf %18, %19 : vector<128x1xf32>
    %21 = math.rsqrt %20 : vector<128x1xf32>
    %c0_10 = arith.constant 0 : index
    %c0_11 = arith.constant 0 : index
    %22 = vector.load %arg5[%c0_10, %c0_11] : memref<128x1xf32, #tpu.memory_space<vmem>>, vector<128x1xf32>
    %23 = arith.mulf %21, %22 : vector<128x1xf32>
    %c0_12 = arith.constant 0 : index
    %c0_13 = arith.constant 0 : index
    %24 = vector.load %arg6[%c0_12, %c0_13] : memref<128x1xf32, #tpu.memory_space<vmem>>, vector<128x1xf32>
    %25 = arith.mulf %12, %23 : vector<128x1xf32>
    %26 = arith.subf %24, %25 : vector<128x1xf32>
    %c0_14 = arith.constant 0 : index
    %c0_15 = arith.constant 0 : index
    %27 = vector.load %arg7[%c0_14, %c0_15] : memref<128x64xf32, #tpu.memory_space<vmem>>, vector<128x64xf32>
    %28 = vector.broadcast %23 : vector<128x1xf32> to vector<128x64xf32>
    %29 = arith.mulf %5, %28 : vector<128x64xf32>
    %30 = vector.broadcast %26 : vector<128x1xf32> to vector<128x64xf32>
    %31 = arith.addf %29, %30 : vector<128x64xf32>
    %32 = arith.addf %27, %31 : vector<128x64xf32>
    %c0_16 = arith.constant 0 : index
    %c0_17 = arith.constant 0 : index
    %33 = vector.load %arg8[%c0_16, %c0_17] : memref<128x64xf32, #tpu.memory_space<vmem>>, vector<128x64xf32>
    tpu.vector_store %arg8[%c0_16, %c0_17], %32 {strides = array<i32>} : memref<128x64xf32, #tpu.memory_space<vmem>>, vector<128x64xf32>,
    return
  }
  func.func @transform_0(%arg0: i32, %arg1: i32) -> (i32, i32) {
    %c0_i32 = arith.constant 0 : i32
    %c0_i32_0 = arith.constant 0 : i32
    %c0_i32_1 = arith.constant 0 : i32
    return %c0_i32, %c0_i32_0 : i32, i32
  }
  func.func @transform_1(%arg0: i32, %arg1: i32) -> (i32, i32) {
    %c0_i32 = arith.constant 0 : i32
    %c0_i32_0 = arith.constant 0 : i32
    %c0_i32_1 = arith.constant 0 : i32
    return %c0_i32, %c0_i32_0 : i32, i32
  }
  func.func @transform_2(%arg0: i32, %arg1: i32) -> (i32, i32) {
    %c2_i32 = arith.constant 2 : i32
    %0 = arith.muli %arg0, %c2_i32 : i32
    %1 = arith.addi %0, %arg1 : i32
    %c0_i32 = arith.constant 0 : i32
    %c0_i32_0 = arith.constant 0 : i32
    return %1, %c0_i32 : i32, i32
  }
  func.func @transform_3(%arg0: i32, %arg1: i32) -> (i32, i32) {
    %c2_i32 = arith.constant 2 : i32
    %0 = arith.muli %arg0, %c2_i32 : i32
    %1 = arith.addi %0, %arg1 : i32
    %c0_i32 = arith.constant 0 : i32
    %c0_i32_0 = arith.constant 0 : i32
    return %1, %c0_i32 : i32, i32
  }
  func.func @transform_4(%arg0: i32, %arg1: i32) -> (i32, i32) {
    %c2_i32 = arith.constant 2 : i32
    %0 = arith.muli %arg0, %c2_i32 : i32
    %1 = arith.addi %0, %arg1 : i32
    %c0_i32 = arith.constant 0 : i32
    %c0_i32_0 = arith.constant 0 : i32
    return %1, %c0_i32 : i32, i32
  }
  func.func @transform_5(%arg0: i32, %arg1: i32) -> (i32, i32) {
    %c2_i32 = arith.constant 2 : i32
    %0 = arith.muli %arg0, %c2_i32 : i32
    %1 = arith.addi %0, %arg1 : i32
    %c0_i32 = arith.constant 0 : i32
    %c0_i32_0 = arith.constant 0 : i32
    return %1, %c0_i32 : i32, i32
  }
  func.func @transform_6(%arg0: i32, %arg1: i32) -> (i32, i32) {
    %c2_i32 = arith.constant 2 : i32
    %0 = arith.muli %arg0, %c2_i32 : i32
    %1 = arith.addi %0, %arg1 : i32
    %c0_i32 = arith.constant 0 : i32
    %c0_i32_0 = arith.constant 0 : i32
    return %1, %c0_i32 : i32, i32
  }
}

</mosaic_0001>

<llo_original>
// kernel: tpu_custom_call.1
$region0: #{tpu_custom_call.1}
  #allocation0 [shape = 'u32[]', space=smem, size = 0x4, offset = 0x4, fixed_abs, tag = 'smem constant byte address 0x4 - core index']
  #allocation1 [shape = 'u32[144,128]{1,0:T(1,128)}', space=vmem, size = 0x12000, scoped, tag = 'internal scratch']
  #allocation2 [shape = 'bf16[448,64]{1,0:T(8,128)(2,1)}', space=vmem, size = 0x1c000, scoped, tag = 'scratch operand']
  %s0 = inlined_call_operand.vmem [shape: f32[448,1], index: 0, kind: input, shape index: {}]
  %s1 = inlined_call_operand.vmem [shape: f32[448,64], index: 1, kind: input, shape index: {}]
  %s2 = inlined_call_operand.vmem [shape: bf16[448,448], index: 2, kind: input, shape index: {}]
  %s3 = inlined_call_operand.vmem [shape: f32[448,1], index: 3, kind: input, shape index: {}]
  %s4 = inlined_call_operand.vmem [shape: f32[448,1], index: 4, kind: input, shape index: {}]
  %s5 = inlined_call_operand.vmem [shape: f32[448,64], index: 5, kind: input, shape index: {}]
  %s6 = inlined_call_operand.vmem [shape: f32[448,64], index: 6, kind: output, shape index: {}]
  %s7 = sld [smem:[#allocation0]]
  $region109: #{tpu_custom_call.1} parent=0
    _
  %s9 = ssub.s32 1, %s7
  %s10 = scalar_select 0, %s9, %s7
  $region1: #{tpu_custom_call.1} parent=0
    #allocation3 [shape = 'u8[131072]{0}', space=vmem, size = 0x20000, scoped, tag = 'output window, operand 0']
    loop: start=0, step=1, limit=6
    $region2: #{tpu_custom_call.1} parent=1 // loop_pre_header
      _
    $region3: #{tpu_custom_call.1} parent=1 // loop_header
      %s12 = sphi 0, %s16
      %p13 = scmp.ge.s32.totalorder %s12, 6
      %s19 = sphi 0, %s31
      %s20 = sphi 0, %s27
      %s21 = sphi 0, %s19
      %s22 = sphi 0, %s20
      %s23 = sphi 0, %s21
      %s24 = sphi 0, %s22
      %s32 = sphi 0, %s32
      %s34 = sphi 0, %s32
      %s35 = sphi 0, %s34
      %s49 = sphi 0, %s35
      %s53 = sphi 0, %s53
      %s55 = sphi 0, %s53
      %s56 = sphi 0, %s55
      %s70 = sphi 0, %s56
      %s80 = sphi 0, %s82
      %s83 = sphi 0, %s80
      %s84 = sphi 0, %s83
      %s100 = sphi 0, %s84
      %s110 = sphi 0, %s112
      %s113 = sphi 0, %s110
      %s114 = sphi 0, %s113
      %s130 = sphi 0, %s114
      %s140 = sphi 0, %s142
      %s143 = sphi 0, %s140
      %s144 = sphi 0, %s143
      %s160 = sphi 0, %s144
      %s170 = sphi 0, %s172
      %s173 = sphi 0, %s170
      %s174 = sphi 0, %s173
      %s190 = sphi 0, %s174
      %s200 = sphi 0, %s202
      %s203 = sphi 0, %s200
      %s204 = sphi 0, %s203
      %s220 = sphi 0, %s204
    $region4: #{tpu_custom_call.1} parent=1 // loop_header_branch
      %15 = sbr.rel (%p13) target = $region8
    $region5: #{tpu_custom_call.1} parent=1 // loop_body
      %s17 = ssub.s32 %s12, 1
      %s18 = ssub.s32 %s12, 2
      %s25 = sadd.s32 1, %s20
      %p26 = scmp.ge.s32.totalorder %s25, 2
      %s27 = scalar_select %p26, 0, %s25
      %s28 = sadd.s32 1, %s19
      %s29 = scalar_select %p26, %s28, %s19
      %p30 = scmp.ge.s32.totalorder %s29, 2
      %s31 = scalar_select %p30, 0, %s29
      %s33 = sadd.s32 %s32, 1
      %p36 = scmp.eq.s32.totalorder %s12, 3
      %p37 = scmp.ne.s32.totalorder %s32, %s34
      %p38 = scmp.eq.s32.totalorder %s12, 0
      %p39 = por %p37, %p38
      %p40 = scmp.ne.s32.totalorder %s32, %s34
      %p41 = scmp.eq.s32.totalorder %s17, 3
      %p42 = por %p40, %p41
      %p43 = scmp.ne.s32.totalorder %s34, %s35
      %p44 = scmp.eq.s32.totalorder %s17, 0
      %p45 = por %p43, %p44
      %p46 = scmp.ne.s32.totalorder %s34, %s35
      %p47 = scmp.eq.s32.totalorder %s18, 3
      %p48 = por %p46, %p47
      %p50 = scmp.ne.s32.totalorder %s35, %s49
      %p51 = scmp.eq.s32.totalorder %s18, 0
      %p52 = por %p50, %p51
      %s54 = sadd.s32 %s53, 1
      %p57 = scmp.eq.s32.totalorder %s12, 3
      %p58 = scmp.ne.s32.totalorder %s53, %s55
      %p59 = scmp.eq.s32.totalorder %s12, 0
      %p60 = por %p58, %p59
      %p61 = scmp.ne.s32.totalorder %s53, %s55
      %p62 = scmp.eq.s32.totalorder %s17, 3
      %p63 = por %p61, %p62
      %p64 = scmp.ne.s32.totalorder %s55, %s56
      %p65 = scmp.eq.s32.totalorder %s17, 0
      %p66 = por %p64, %p65
      %p67 = scmp.ne.s32.totalorder %s55, %s56
      %p68 = scmp.eq.s32.totalorder %s18, 3
      %p69 = por %p67, %p68
      %p71 = scmp.ne.s32.totalorder %s56, %s70
      %p72 = scmp.eq.s32.totalorder %s18, 0
      %p73 = por %p71, %p72
      %s74 = smul.u32 %s19, 2
      %s75 = sadd.s32 %s74, %s20
      %s76 = smul.u32 %s31, 2
      %s77 = sadd.s32 %s76, %s27
      %s78 = ssub.s32 %s75, %s77
      %p79 = scmp.eq.s32.totalorder %s78, 0
      %s81 = sadd.s32 %s80, 1
      %s82 = scalar_select %p79, %s80, %s81
      %p85 = pneg %p79
      %p86 = scmp.eq.s32.totalorder %s12, 3
      %p87 = por %p85, %p86
      %p88 = scmp.ne.s32.totalorder %s80, %s83
      %p89 = scmp.eq.s32.totalorder %s12, 0
      %p90 = por %p88, %p89
      %p91 = scmp.ne.s32.totalorder %s80, %s83
      %p92 = scmp.eq.s32.totalorder %s17, 3
      %p93 = por %p91, %p92
      %p94 = scmp.ne.s32.totalorder %s83, %s84
      %p95 = scmp.eq.s32.totalorder %s17, 0
      %p96 = por %p94, %p95
      %p97 = scmp.ne.s32.totalorder %s83, %s84
      %p98 = scmp.eq.s32.totalorder %s18, 3
      %p99 = por %p97, %p98
      %p101 = scmp.ne.s32.totalorder %s84, %s100
      %p102 = scmp.eq.s32.totalorder %s18, 0
      %p103 = por %p101, %p102
      %s104 = smul.u32 %s19, 2
      %s105 = sadd.s32 %s104, %s20
      %s106 = smul.u32 %s31, 2
      %s107 = sadd.s32 %s106, %s27
      %s108 = ssub.s32 %s105, %s107
      %p109 = scmp.eq.s32.totalorder %s108, 0
      %s111 = sadd.s32 %s110, 1
      %s112 = scalar_select %p109, %s110, %s111
      %p115 = pneg %p109
      %p116 = scmp.eq.s32.totalorder %s12, 3
      %p117 = por %p115, %p116
      %p118 = scmp.ne.s32.totalorder %s110, %s113
      %p119 = scmp.eq.s32.totalorder %s12, 0
      %p120 = por %p118, %p119
      %p121 = scmp.ne.s32.totalorder %s110, %s113
      %p122 = scmp.eq.s32.totalorder %s17, 3
      %p123 = por %p121, %p122
      %p124 = scmp.ne.s32.totalorder %s113, %s114
      %p125 = scmp.eq.s32.totalorder %s17, 0
      %p126 = por %p124, %p125
      %p127 = scmp.ne.s32.totalorder %s113, %s114
      %p128 = scmp.eq.s32.totalorder %s18, 3
      %p129 = por %p127, %p128
      %p131 = scmp.ne.s32.totalorder %s114, %s130
      %p132 = scmp.eq.s32.totalorder %s18, 0
      %p133 = por %p131, %p132
      %s134 = smul.u32 %s19, 2
      %s135 = sadd.s32 %s134, %s20
      %s136 = smul.u32 %s31, 2
      %s137 = sadd.s32 %s136, %s27
      %s138 = ssub.s32 %s135, %s137
      %p139 = scmp.eq.s32.totalorder %s138, 0
      %s141 = sadd.s32 %s140, 1
      %s142 = scalar_select %p139, %s140, %s141
      %p145 = pneg %p139
      %p146 = scmp.eq.s32.totalorder %s12, 3
      %p147 = por %p145, %p146
      %p148 = scmp.ne.s32.totalorder %s140, %s143
      %p149 = scmp.eq.s32.totalorder %s12, 0
      %p150 = por %p148, %p149
      %p151 = scmp.ne.s32.totalorder %s140, %s143
      %p152 = scmp.eq.s32.totalorder %s17, 3
      %p153 = por %p151, %p152
      %p154 = scmp.ne.s32.totalorder %s143, %s144
      %p155 = scmp.eq.s32.totalorder %s17, 0
      %p156 = por %p154, %p155
      %p157 = scmp.ne.s32.totalorder %s143, %s144
      %p158 = scmp.eq.s32.totalorder %s18, 3
      %p159 = por %p157, %p158
      %p161 = scmp.ne.s32.totalorder %s144, %s160
      %p162 = scmp.eq.s32.totalorder %s18, 0
      %p163 = por %p161, %p162
      %s164 = smul.u32 %s19, 2
      %s165 = sadd.s32 %s164, %s20
      %s166 = smul.u32 %s31, 2
      %s167 = sadd.s32 %s166, %s27
      %s168 = ssub.s32 %s165, %s167
      %p169 = scmp.eq.s32.totalorder %s168, 0
      %s171 = sadd.s32 %s170, 1
      %s172 = scalar_select %p169, %s170, %s171
      %p175 = pneg %p169
      %p176 = scmp.eq.s32.totalorder %s12, 3
      %p177 = por %p175, %p176
      %p178 = scmp.ne.s32.totalorder %s170, %s173
      %p179 = scmp.eq.s32.totalorder %s12, 0
      %p180 = por %p178, %p179
      %p181 = scmp.ne.s32.totalorder %s170, %s173
      %p182 = scmp.eq.s32.totalorder %s17, 3
      %p183 = por %p181, %p182
      %p184 = scmp.ne.s32.totalorder %s173, %s174
      %p185 = scmp.eq.s32.totalorder %s17, 0
      %p186 = por %p184, %p185
      %p187 = scmp.ne.s32.totalorder %s173, %s174
      %p188 = scmp.eq.s32.totalorder %s18, 3
      %p189 = por %p187, %p188
      %p191 = scmp.ne.s32.totalorder %s174, %s190
      %p192 = scmp.eq.s32.totalorder %s18, 0
      %p193 = por %p191, %p192
      %s194 = smul.u32 %s19, 2
      %s195 = sadd.s32 %s194, %s20
      %s196 = smul.u32 %s31, 2
      %s197 = sadd.s32 %s196, %s27
      %s198 = ssub.s32 %s195, %s197
      %p199 = scmp.eq.s32.totalorder %s198, 0
      %s201 = sadd.s32 %s200, 1
      %s202 = scalar_select %p199, %s200, %s201
      %p205 = pneg %p199
      %p206 = scmp.eq.s32.totalorder %s12, 3
      %p207 = por %p205, %p206
      %p208 = scmp.ne.s32.totalorder %s200, %s203
      %p209 = scmp.eq.s32.totalorder %s12, 0
      %p210 = por %p208, %p209
      %p211 = scmp.ne.s32.totalorder %s200, %s203
      %p212 = scmp.eq.s32.totalorder %s17, 3
      %p213 = por %p211, %p212
      %p214 = scmp.ne.s32.totalorder %s203, %s204
      %p215 = scmp.eq.s32.totalorder %s17, 0
      %p216 = por %p214, %p215
      %p217 = scmp.ne.s32.totalorder %s203, %s204
      %p218 = scmp.eq.s32.totalorder %s18, 3
      %p219 = por %p217, %p218
      %p221 = scmp.ne.s32.totalorder %s204, %s220
      %p222 = scmp.eq.s32.totalorder %s18, 0
      %p223 = por %p221, %p222
      %p224 = scmp.le.s32.totalorder 1, %s12
      %p225 = scmp.lt.s32.totalorder %s12, 5
      %p226 = pnand %p224, %p225
      %p227 = pneg %p226
      // Predicated region
      $region9: #{tpu_custom_call.1} parent=5 // pred_check
        _
      $region10: #{tpu_custom_call.1} parent=5 // pred_check_branch
        %229 = sbr.rel (%p226) target = $region12
      $region11: #{tpu_custom_call.1} parent=5 // pred_region
        %s230 = ssub.s32 %s12, 1
        // Predicated region
        $region13: #{tpu_custom_call.1} parent=11 // pred_check
          %p231 = pneg %p45
        $region14: #{tpu_custom_call.1} parent=11 // pred_check_branch
          %233 = sbr.rel (%p231) target = $region16
        $region15: #{tpu_custom_call.1} parent=11 // pred_region
          _
        $region16: #{tpu_custom_call.1} parent=11 // pred_fallthru
          _
        // Predicated region
        $region17: #{tpu_custom_call.1} parent=11 // pred_check
          %p234 = pneg %p66
        $region18: #{tpu_custom_call.1} parent=11 // pred_check_branch
          %236 = sbr.rel (%p234) target = $region20
        $region19: #{tpu_custom_call.1} parent=11 // pred_region
          _
        $region20: #{tpu_custom_call.1} parent=11 // pred_fallthru
          _
      $region12: #{tpu_custom_call.1} parent=5 // pred_fallthru
        _
      %p237 = scmp.lt.s32.totalorder %s12, 4
      // Predicated region
      $region21: #{tpu_custom_call.1} parent=5 // pred_check
        %p238 = pneg %p237
      $region22: #{tpu_custom_call.1} parent=5 // pred_check_branch
        %240 = sbr.rel (%p238) target = $region24
      $region23: #{tpu_custom_call.1} parent=5 // pred_region
        // Predicated region
        $region25: #{tpu_custom_call.1} parent=23 // pred_check
          %p241 = pneg %p90
        $region26: #{tpu_custom_call.1} parent=23 // pred_check_branch
          %243 = sbr.rel (%p241) target = $region28
        $region27: #{tpu_custom_call.1} parent=23 // pred_region
          %s244 = smul.u32 %s19, 2
          %s245 = sadd.s32 %s244, %s20
          %s246 = smul.u32 16, %s245
          %s247 = ssub.s32 56, %s246
          %p248 = scmp.lt.s32.totalorder %s247, 16
          %s249 = scalar_select %p248, %s247, 16
          %s250 = smul.u32 64, %s249
          %s251 = smul.u32 %s250, 4
          %p252 = scmp.lt.s32.totalorder %s246, 55
          %s253 = scalar_select %p252, %s246, 55
          %s254 = smul.addr %s253, 4
          %s255 = smul.addr %s254, 4
          %s256 = scalar_lea.vmem %s2, %s255
          %s257 = smul.u32 %s19, 2
          %s258 = sadd.s32 %s257, %s20
          %s259 = smul.u32 16, %s258
          %s260 = ssub.s32 56, %s259
          %p261 = scmp.lt.s32.totalorder %s260, 16
          %s262 = scalar_select %p261, %s260, 16
          %s263 = smul.u32 64, %s262
          %s264 = smul.u32 %s263, 4
        $region28: #{tpu_custom_call.1} parent=23 // pred_fallthru
          _
        // Predicated region
        $region29: #{tpu_custom_call.1} parent=23 // pred_check
          %p265 = pneg %p120
        $region30: #{tpu_custom_call.1} parent=23 // pred_check_branch
          %267 = sbr.rel (%p265) target = $region32
        $region31: #{tpu_custom_call.1} parent=23 // pred_region
          %s268 = smul.u32 %s19, 2
          %s269 = sadd.s32 %s268, %s20
          %s270 = smul.u32 16, %s269
          %s271 = ssub.s32 56, %s270
          %p272 = scmp.lt.s32.totalorder %s271, 16
          %s273 = scalar_select %p272, %s271, 16
          %s274 = smul.u32 128, %s273
          %p275 = scmp.lt.s32.totalorder %s270, 55
          %s276 = scalar_select %p275, %s270, 55
          %s277 = smul.addr %s276, 8
          %s278 = scalar_lea.vmem %s3, %s277
          %s279 = smul.u32 %s19, 2
          %s280 = sadd.s32 %s279, %s20
          %s281 = smul.u32 16, %s280
          %s282 = ssub.s32 56, %s281
          %p283 = scmp.lt.s32.totalorder %s282, 16
          %s284 = scalar_select %p283, %s282, 16
          %s285 = smul.u32 128, %s284
        $region32: #{tpu_custom_call.1} parent=23 // pred_fallthru
          _
        // Predicated region
        $region33: #{tpu_custom_call.1} parent=23 // pred_check
          %p286 = pneg %p150
        $region34: #{tpu_custom_call.1} parent=23 // pred_check_branch
          %288 = sbr.rel (%p286) target = $region36
        $region35: #{tpu_custom_call.1} parent=23 // pred_region
          %s289 = smul.u32 %s19, 2
          %s290 = sadd.s32 %s289, %s20
          %s291 = smul.u32 16, %s290
          %s292 = ssub.s32 56, %s291
          %p293 = scmp.lt.s32.totalorder %s292, 16
          %s294 = scalar_select %p293, %s292, 16
          %s295 = smul.u32 128, %s294
          %p296 = scmp.lt.s32.totalorder %s291, 55
          %s297 = scalar_select %p296, %s291, 55
          %s298 = smul.addr %s297, 8
          %s299 = scalar_lea.vmem %s4, %s298
          %s300 = smul.u32 %s19, 2
          %s301 = sadd.s32 %s300, %s20
          %s302 = smul.u32 16, %s301
          %s303 = ssub.s32 56, %s302
          %p304 = scmp.lt.s32.totalorder %s303, 16
          %s305 = scalar_select %p304, %s303, 16
          %s306 = smul.u32 128, %s305
        $region36: #{tpu_custom_call.1} parent=23 // pred_fallthru
          _
        // Predicated region
        $region37: #{tpu_custom_call.1} parent=23 // pred_check
          %p307 = pneg %p180
        $region38: #{tpu_custom_call.1} parent=23 // pred_check_branch
          %309 = sbr.rel (%p307) target = $region40
        $region39: #{tpu_custom_call.1} parent=23 // pred_region
          %s310 = smul.u32 %s19, 2
          %s311 = sadd.s32 %s310, %s20
          %s312 = smul.u32 16, %s311
          %s313 = ssub.s32 56, %s312
          %p314 = scmp.lt.s32.totalorder %s313, 16
          %s315 = scalar_select %p314, %s313, 16
          %s316 = smul.u32 128, %s315
          %p317 = scmp.lt.s32.totalorder %s312, 55
          %s318 = scalar_select %p317, %s312, 55
          %s319 = smul.addr %s318, 8
          %s320 = scalar_lea.vmem %s5, %s319
          %s321 = smul.u32 %s19, 2
          %s322 = sadd.s32 %s321, %s20
          %s323 = smul.u32 16, %s322
          %s324 = ssub.s32 56, %s323
          %p325 = scmp.lt.s32.totalorder %s324, 16
          %s326 = scalar_select %p325, %s324, 16
          %s327 = smul.u32 128, %s326
        $region40: #{tpu_custom_call.1} parent=23 // pred_fallthru
          _
      $region24: #{tpu_custom_call.1} parent=5 // pred_fallthru
        _
      %p328 = scmp.le.s32.totalorder 1, %s12
      %p329 = scmp.lt.s32.totalorder %s12, 5
      %p330 = pnand %p328, %p329
      %p331 = pneg %p330
      // Predicated region
      $region41: #{tpu_custom_call.1} parent=5 // pred_check
        _
      $region42: #{tpu_custom_call.1} parent=5 // pred_check_branch
        %333 = sbr.rel (%p330) target = $region44
      $region43: #{tpu_custom_call.1} parent=5 // pred_region
        %s334 = ssub.s32 %s12, 1
        %p335 = pneg %p45
        %p336 = pneg %p42
        %p337 = pneg %p66
        %p338 = pneg %p63
        %s339 = smul.u32 %s21, 2
        %s340 = sadd.s32 %s339, %s22
        %s341 = smul.u32 16, %s340
        %s342 = ssub.s32 56, %s341
        %p343 = scmp.lt.s32.totalorder %s342, 16
        %s344 = scalar_select %p343, %s342, 16
        %s345 = smul.u32 64, %s344
        %s346 = smul.u32 %s345, 4
        %p347 = scmp.lt.s32.totalorder %s341, 55
        %s348 = scalar_select %p347, %s341, 55
        %s349 = smul.addr %s348, 4
        %s350 = smul.addr %s349, 4
        %s351 = scalar_lea.vmem %s2, %s350
        %p352 = pneg %p96
        %p353 = pneg %p93
        %s354 = smul.u32 %s21, 2
        %s355 = sadd.s32 %s354, %s22
        %s356 = smul.u32 16, %s355
        %s357 = ssub.s32 56, %s356
        %p358 = scmp.lt.s32.totalorder %s357, 16
        %s359 = scalar_select %p358, %s357, 16
        %s360 = smul.u32 128, %s359
        %p361 = scmp.lt.s32.totalorder %s356, 55
        %s362 = scalar_select %p361, %s356, 55
        %s363 = smul.addr %s362, 8
        %s364 = scalar_lea.vmem %s3, %s363
        %p365 = pneg %p126
        %p366 = pneg %p123
        %s367 = smul.u32 %s21, 2
        %s368 = sadd.s32 %s367, %s22
        %s369 = smul.u32 16, %s368
        %s370 = ssub.s32 56, %s369
        %p371 = scmp.lt.s32.totalorder %s370, 16
        %s372 = scalar_select %p371, %s370, 16
        %s373 = smul.u32 128, %s372
        %p374 = scmp.lt.s32.totalorder %s369, 55
        %s375 = scalar_select %p374, %s369, 55
        %s376 = smul.addr %s375, 8
        %s377 = scalar_lea.vmem %s4, %s376
        %p378 = pneg %p156
        %p379 = pneg %p153
        %s380 = smul.u32 %s21, 2
        %s381 = sadd.s32 %s380, %s22
        %s382 = smul.u32 16, %s381
        %s383 = ssub.s32 56, %s382
        %p384 = scmp.lt.s32.totalorder %s383, 16
        %s385 = scalar_select %p384, %s383, 16
        %s386 = smul.u32 128, %s385
        %p387 = scmp.lt.s32.totalorder %s382, 55
        %s388 = scalar_select %p387, %s382, 55
        %s389 = smul.addr %s388, 8
        %s390 = scalar_lea.vmem %s5, %s389
        %p391 = pneg %p186
        %p392 = pneg %p183
        %p393 = pneg %p216
        %p394 = pneg %p213
        %s395 = sand.u32 %s203, 1
        %s396 = sand.u32 %s203, 1
        %s397 = smul.addr %s396, 128
        %s398 = scalar_lea.vmem [#allocation3], %s397
        %s399 = smul.u32 %s21, 2
        %s400 = sadd.s32 %s399, %s22
        %s401 = smul.u32 16, %s400
        %s402 = ssub.s32 56, %s401
        %p403 = scmp.lt.s32.totalorder %s402, 16
        %s404 = scalar_select %p403, %s402, 16
        %s405 = smul.u32 64, %s404
        %s406 = smul.u32 %s405, 4
        %p407 = scmp.lt.s32.totalorder %s401, 55
        %s408 = scalar_select %p407, %s401, 55
        %s409 = smul.addr %s408, 4
        %s410 = smul.addr %s409, 4
        %s411 = scalar_lea.vmem %s2, %s410
        %s412 = smul.u32 %s21, 2
        %s413 = sadd.s32 %s412, %s22
        %s414 = smul.u32 16, %s413
        %s415 = ssub.s32 56, %s414
        %p416 = scmp.lt.s32.totalorder %s415, 16
        %s417 = scalar_select %p416, %s415, 16
        %s418 = smul.u32 64, %s417
        %s419 = smul.u32 %s418, 4
        %s420 = smul.u32 %s21, 2
        %s421 = sadd.s32 %s420, %s22
        %s422 = smul.u32 16, %s421
        %s423 = ssub.s32 56, %s422
        %p424 = scmp.lt.s32.totalorder %s423, 16
        %s425 = scalar_select %p424, %s423, 16
        %s426 = smul.u32 128, %s425
        %p427 = scmp.lt.s32.totalorder %s422, 55
        %s428 = scalar_select %p427, %s422, 55
        %s429 = smul.addr %s428, 8
        %s430 = scalar_lea.vmem %s3, %s429
        %s431 = smul.u32 %s21, 2
        %s432 = sadd.s32 %s431, %s22
        %s433 = smul.u32 16, %s432
        %s434 = ssub.s32 56, %s433
        %p435 = scmp.lt.s32.totalorder %s434, 16
        %s436 = scalar_select %p435, %s434, 16
        %s437 = smul.u32 128, %s436
        %s438 = smul.u32 %s21, 2
        %s439 = sadd.s32 %s438, %s22
        %s440 = smul.u32 16, %s439
        %s441 = ssub.s32 56, %s440
        %p442 = scmp.lt.s32.totalorder %s441, 16
        %s443 = scalar_select %p442, %s441, 16
        %s444 = smul.u32 128, %s443
        %p445 = scmp.lt.s32.totalorder %s440, 55
        %s446 = scalar_select %p445, %s440, 55
        %s447 = smul.addr %s446, 8
        %s448 = scalar_lea.vmem %s4, %s447
        %s449 = smul.u32 %s21, 2
        %s450 = sadd.s32 %s449, %s22
        %s451 = smul.u32 16, %s450
        %s452 = ssub.s32 56, %s451
        %p453 = scmp.lt.s32.totalorder %s452, 16
        %s454 = scalar_select %p453, %s452, 16
        %s455 = smul.u32 128, %s454
        %s456 = smul.u32 %s21, 2
        %s457 = sadd.s32 %s456, %s22
        %s458 = smul.u32 16, %s457
        %s459 = ssub.s32 56, %s458
        %p460 = scmp.lt.s32.totalorder %s459, 16
        %s461 = scalar_select %p460, %s459, 16
        %s462 = smul.u32 128, %s461
        %p463 = scmp.lt.s32.totalorder %s458, 55
        %s464 = scalar_select %p463, %s458, 55
        %s465 = smul.addr %s464, 8
        %s466 = scalar_lea.vmem %s5, %s465
        %s467 = smul.u32 %s21, 2
        %s468 = sadd.s32 %s467, %s22
        %s469 = smul.u32 16, %s468
        %s470 = ssub.s32 56, %s469
        %p471 = scmp.lt.s32.totalorder %s470, 16
        %s472 = scalar_select %p471, %s470, 16
        %s473 = smul.u32 128, %s472
        %s474 = smul.u32 %s21, 2
        %s475 = sadd.s32 %s474, %s22
        %s476 = smul.u32 16, %s475
        %s477 = ssub.s32 56, %s476
        %p478 = scmp.lt.s32.totalorder %s477, 16
        %s479 = scalar_select %p478, %s477, 16
        %s480 = smul.u32 128, %s479
        %p482 = scmp.eq.s32.totalorder %s22, 0
        // Predicated region
        $region45: #{tpu_custom_call.1} parent=43 // pred_check
          %p483 = pneg %p482
        $region46: #{tpu_custom_call.1} parent=43 // pred_check_branch
          %485 = sbr.rel (%p483) target = $region48
        $region47: #{tpu_custom_call.1} parent=43 // pred_region
          %v486 = vld [vmem:[%s1] sm:$0xff]
          %v487 = vld [vmem:[%s1 + $0x8] sm:$0xff]
          %v488 = vld [vmem:[%s1 + $0x10] sm:$0xff]
          %v489 = vld [vmem:[%s1 + $0x18] sm:$0xff]
          %v490 = vld [vmem:[%s1 + $0x20] sm:$0xff]
          %v491 = vld [vmem:[%s1 + $0x28] sm:$0xff]
          %v492 = vld [vmem:[%s1 + $0x30] sm:$0xff]
          %v493 = vld [vmem:[%s1 + $0x38] sm:$0xff]
          %v494 = vld [vmem:[%s1 + $0x40] sm:$0xff]
          %v495 = vld [vmem:[%s1 + $0x48] sm:$0xff]
          %v496 = vld [vmem:[%s1 + $0x50] sm:$0xff]
          %v497 = vld [vmem:[%s1 + $0x58] sm:$0xff]
          %v498 = vld [vmem:[%s1 + $0x60] sm:$0xff]
          %v499 = vld [vmem:[%s1 + $0x68] sm:$0xff]
          %v500 = vld [vmem:[%s1 + $0x70] sm:$0xff]
          %v501 = vld [vmem:[%s1 + $0x78] sm:$0xff]
          %v502 = vld [vmem:[%s1 + $0x80] sm:$0xff]
          %v503 = vld [vmem:[%s1 + $0x88] sm:$0xff]
          %v504 = vld [vmem:[%s1 + $0x90] sm:$0xff]
          %v505 = vld [vmem:[%s1 + $0x98] sm:$0xff]
          %v506 = vld [vmem:[%s1 + $0xa0] sm:$0xff]
          %v507 = vld [vmem:[%s1 + $0xa8] sm:$0xff]
          %v508 = vld [vmem:[%s1 + $0xb0] sm:$0xff]
          %v509 = vld [vmem:[%s1 + $0xb8] sm:$0xff]
          %v510 = vld [vmem:[%s1 + $0xc0] sm:$0xff]
          %v511 = vld [vmem:[%s1 + $0xc8] sm:$0xff]
          %v512 = vld [vmem:[%s1 + $0xd0] sm:$0xff]
          %v513 = vld [vmem:[%s1 + $0xd8] sm:$0xff]
          %v514 = vld [vmem:[%s1 + $0xe0] sm:$0xff]
          %v515 = vld [vmem:[%s1 + $0xe8] sm:$0xff]
          %v516 = vld [vmem:[%s1 + $0xf0] sm:$0xff]
          %v517 = vld [vmem:[%s1 + $0xf8] sm:$0xff]
          %v518 = vld [vmem:[%s1 + $0x100] sm:$0xff]
          %v519 = vld [vmem:[%s1 + $0x108] sm:$0xff]
          %v520 = vld [vmem:[%s1 + $0x110] sm:$0xff]
          %v521 = vld [vmem:[%s1 + $0x118] sm:$0xff]
          %v522 = vld [vmem:[%s1 + $0x120] sm:$0xff]
          %v523 = vld [vmem:[%s1 + $0x128] sm:$0xff]
          %v524 = vld [vmem:[%s1 + $0x130] sm:$0xff]
          %v525 = vld [vmem:[%s1 + $0x138] sm:$0xff]
          %v526 = vld [vmem:[%s1 + $0x140] sm:$0xff]
          %v527 = vld [vmem:[%s1 + $0x148] sm:$0xff]
          %v528 = vld [vmem:[%s1 + $0x150] sm:$0xff]
          %v529 = vld [vmem:[%s1 + $0x158] sm:$0xff]
          %v530 = vld [vmem:[%s1 + $0x160] sm:$0xff]
          %v531 = vld [vmem:[%s1 + $0x168] sm:$0xff]
          %v532 = vld [vmem:[%s1 + $0x170] sm:$0xff]
          %v533 = vld [vmem:[%s1 + $0x178] sm:$0xff]
          %v534 = vld [vmem:[%s1 + $0x180] sm:$0xff]
          %v535 = vld [vmem:[%s1 + $0x188] sm:$0xff]
          %v536 = vld [vmem:[%s1 + $0x190] sm:$0xff]
          %v537 = vld [vmem:[%s1 + $0x198] sm:$0xff]
          %v538 = vld [vmem:[%s1 + $0x1a0] sm:$0xff]
          %v539 = vld [vmem:[%s1 + $0x1a8] sm:$0xff]
          %v540 = vld [vmem:[%s1 + $0x1b0] sm:$0xff]
          %v541 = vld [vmem:[%s1 + $0x1b8] sm:$0xff]
          %v542 = vld [vmem:[%s0] sm:$0xff]
          %v543 = vld [vmem:[%s0 + $0x8] sm:$0xff]
          %v544 = vld [vmem:[%s0 + $0x10] sm:$0xff]
          %v545 = vld [vmem:[%s0 + $0x18] sm:$0xff]
          %v546 = vld [vmem:[%s0 + $0x20] sm:$0xff]
          %v547 = vld [vmem:[%s0 + $0x28] sm:$0xff]
          %v548 = vld [vmem:[%s0 + $0x30] sm:$0xff]
          %v549 = vld [vmem:[%s0 + $0x38] sm:$0xff]
          %v550 = vld [vmem:[%s0 + $0x40] sm:$0xff]
          %v551 = vld [vmem:[%s0 + $0x48] sm:$0xff]
          %v552 = vld [vmem:[%s0 + $0x50] sm:$0xff]
          %v553 = vld [vmem:[%s0 + $0x58] sm:$0xff]
          %v554 = vld [vmem:[%s0 + $0x60] sm:$0xff]
          %v555 = vld [vmem:[%s0 + $0x68] sm:$0xff]
          %v556 = vld [vmem:[%s0 + $0x70] sm:$0xff]
          %v557 = vld [vmem:[%s0 + $0x78] sm:$0xff]
          %v558 = vld [vmem:[%s0 + $0x80] sm:$0xff]
          %v559 = vld [vmem:[%s0 + $0x88] sm:$0xff]
          %v560 = vld [vmem:[%s0 + $0x90] sm:$0xff]
          %v561 = vld [vmem:[%s0 + $0x98] sm:$0xff]
          %v562 = vld [vmem:[%s0 + $0xa0] sm:$0xff]
          %v563 = vld [vmem:[%s0 + $0xa8] sm:$0xff]
          %v564 = vld [vmem:[%s0 + $0xb0] sm:$0xff]
          %v565 = vld [vmem:[%s0 + $0xb8] sm:$0xff]
          %v566 = vld [vmem:[%s0 + $0xc0] sm:$0xff]
          %v567 = vld [vmem:[%s0 + $0xc8] sm:$0xff]
          %v568 = vld [vmem:[%s0 + $0xd0] sm:$0xff]
          %v569 = vld [vmem:[%s0 + $0xd8] sm:$0xff]
          %v570 = vld [vmem:[%s0 + $0xe0] sm:$0xff]
          %v571 = vld [vmem:[%s0 + $0xe8] sm:$0xff]
          %v572 = vld [vmem:[%s0 + $0xf0] sm:$0xff]
          %v573 = vld [vmem:[%s0 + $0xf8] sm:$0xff]
          %v574 = vld [vmem:[%s0 + $0x100] sm:$0xff]
          %v575 = vld [vmem:[%s0 + $0x108] sm:$0xff]
          %v576 = vld [vmem:[%s0 + $0x110] sm:$0xff]
          %v577 = vld [vmem:[%s0 + $0x118] sm:$0xff]
          %v578 = vld [vmem:[%s0 + $0x120] sm:$0xff]
          %v579 = vld [vmem:[%s0 + $0x128] sm:$0xff]
          %v580 = vld [vmem:[%s0 + $0x130] sm:$0xff]
          %v581 = vld [vmem:[%s0 + $0x138] sm:$0xff]
          %v582 = vld [vmem:[%s0 + $0x140] sm:$0xff]
          %v583 = vld [vmem:[%s0 + $0x148] sm:$0xff]
          %v584 = vld [vmem:[%s0 + $0x150] sm:$0xff]
          %v585 = vld [vmem:[%s0 + $0x158] sm:$0xff]
          %v586 = vld [vmem:[%s0 + $0x160] sm:$0xff]
          %v587 = vld [vmem:[%s0 + $0x168] sm:$0xff]
          %v588 = vld [vmem:[%s0 + $0x170] sm:$0xff]
          %v589 = vld [vmem:[%s0 + $0x178] sm:$0xff]
          %v590 = vld [vmem:[%s0 + $0x180] sm:$0xff]
          %v591 = vld [vmem:[%s0 + $0x188] sm:$0xff]
          %v592 = vld [vmem:[%s0 + $0x190] sm:$0xff]
          %v593 = vld [vmem:[%s0 + $0x198] sm:$0xff]
          %v594 = vld [vmem:[%s0 + $0x1a0] sm:$0xff]
          %v595 = vld [vmem:[%s0 + $0x1a8] sm:$0xff]
          %v596 = vld [vmem:[%s0 + $0x1b0] sm:$0xff]
          %v597 = vld [vmem:[%s0 + $0x1b8] sm:$0xff]
          %599 = vset.pattern.permute.xlu0 0
          %600 = vperm.xlu0 %599, %v542
          %v601 = vpop.permute.xlu0 %600
          %604 = vset.pattern.permute.xlu0 0
          %605 = vperm.xlu0 %604, %v543
          %v606 = vpop.permute.xlu0 %605
          %609 = vset.pattern.permute.xlu0 0
          %610 = vperm.xlu0 %609, %v544
          %v611 = vpop.permute.xlu0 %610
          %614 = vset.pattern.permute.xlu0 0
          %615 = vperm.xlu0 %614, %v545
          %v616 = vpop.permute.xlu0 %615
          %619 = vset.pattern.permute.xlu0 0
          %620 = vperm.xlu0 %619, %v546
          %v621 = vpop.permute.xlu0 %620
          %624 = vset.pattern.permute.xlu0 0
          %625 = vperm.xlu0 %624, %v547
          %v626 = vpop.permute.xlu0 %625
          %629 = vset.pattern.permute.xlu0 0
          %630 = vperm.xlu0 %629, %v548
          %v631 = vpop.permute.xlu0 %630
          %634 = vset.pattern.permute.xlu0 0
          %635 = vperm.xlu0 %634, %v549
          %v636 = vpop.permute.xlu0 %635
          %639 = vset.pattern.permute.xlu0 0
          %640 = vperm.xlu0 %639, %v550
          %v641 = vpop.permute.xlu0 %640
          %644 = vset.pattern.permute.xlu0 0
          %645 = vperm.xlu0 %644, %v551
          %v646 = vpop.permute.xlu0 %645
          %649 = vset.pattern.permute.xlu0 0
          %650 = vperm.xlu0 %649, %v552
          %v651 = vpop.permute.xlu0 %650
          %654 = vset.pattern.permute.xlu0 0
          %655 = vperm.xlu0 %654, %v553
          %v656 = vpop.permute.xlu0 %655
          %659 = vset.pattern.permute.xlu0 0
          %660 = vperm.xlu0 %659, %v554
          %v661 = vpop.permute.xlu0 %660
          %664 = vset.pattern.permute.xlu0 0
          %665 = vperm.xlu0 %664, %v555
          %v666 = vpop.permute.xlu0 %665
          %669 = vset.pattern.permute.xlu0 0
          %670 = vperm.xlu0 %669, %v556
          %v671 = vpop.permute.xlu0 %670
          %674 = vset.pattern.permute.xlu0 0
          %675 = vperm.xlu0 %674, %v557
          %v676 = vpop.permute.xlu0 %675
          %679 = vset.pattern.permute.xlu0 0
          %680 = vperm.xlu0 %679, %v558
          %v681 = vpop.permute.xlu0 %680
          %684 = vset.pattern.permute.xlu0 0
          %685 = vperm.xlu0 %684, %v559
          %v686 = vpop.permute.xlu0 %685
          %689 = vset.pattern.permute.xlu0 0
          %690 = vperm.xlu0 %689, %v560
          %v691 = vpop.permute.xlu0 %690
          %694 = vset.pattern.permute.xlu0 0
          %695 = vperm.xlu0 %694, %v561
          %v696 = vpop.permute.xlu0 %695
          %699 = vset.pattern.permute.xlu0 0
          %700 = vperm.xlu0 %699, %v562
          %v701 = vpop.permute.xlu0 %700
          %704 = vset.pattern.permute.xlu0 0
          %705 = vperm.xlu0 %704, %v563
          %v706 = vpop.permute.xlu0 %705
          %709 = vset.pattern.permute.xlu0 0
          %710 = vperm.xlu0 %709, %v564
          %v711 = vpop.permute.xlu0 %710
          %714 = vset.pattern.permute.xlu0 0
          %715 = vperm.xlu0 %714, %v565
          %v716 = vpop.permute.xlu0 %715
          %719 = vset.pattern.permute.xlu0 0
          %720 = vperm.xlu0 %719, %v566
          %v721 = vpop.permute.xlu0 %720
          %724 = vset.pattern.permute.xlu0 0
          %725 = vperm.xlu0 %724, %v567
          %v726 = vpop.permute.xlu0 %725
          %729 = vset.pattern.permute.xlu0 0
          %730 = vperm.xlu0 %729, %v568
          %v731 = vpop.permute.xlu0 %730
          %734 = vset.pattern.permute.xlu0 0
          %735 = vperm.xlu0 %734, %v569
          %v736 = vpop.permute.xlu0 %735
          %739 = vset.pattern.permute.xlu0 0
          %740 = vperm.xlu0 %739, %v570
          %v741 = vpop.permute.xlu0 %740
          %744 = vset.pattern.permute.xlu0 0
          %745 = vperm.xlu0 %744, %v571
          %v746 = vpop.permute.xlu0 %745
          %749 = vset.pattern.permute.xlu0 0
          %750 = vperm.xlu0 %749, %v572
          %v751 = vpop.permute.xlu0 %750
          %754 = vset.pattern.permute.xlu0 0
          %755 = vperm.xlu0 %754, %v573
          %v756 = vpop.permute.xlu0 %755
          %759 = vset.pattern.permute.xlu0 0
          %760 = vperm.xlu0 %759, %v574
          %v761 = vpop.permute.xlu0 %760
          %764 = vset.pattern.permute.xlu0 0
          %765 = vperm.xlu0 %764, %v575
          %v766 = vpop.permute.xlu0 %765
          %769 = vset.pattern.permute.xlu0 0
          %770 = vperm.xlu0 %769, %v576
          %v771 = vpop.permute.xlu0 %770
          %774 = vset.pattern.permute.xlu0 0
          %775 = vperm.xlu0 %774, %v577
          %v776 = vpop.permute.xlu0 %775
          %779 = vset.pattern.permute.xlu0 0
          %780 = vperm.xlu0 %779, %v578
          %v781 = vpop.permute.xlu0 %780
          %784 = vset.pattern.permute.xlu0 0
          %785 = vperm.xlu0 %784, %v579
          %v786 = vpop.permute.xlu0 %785
          %789 = vset.pattern.permute.xlu0 0
          %790 = vperm.xlu0 %789, %v580
          %v791 = vpop.permute.xlu0 %790
          %794 = vset.pattern.permute.xlu0 0
          %795 = vperm.xlu0 %794, %v581
          %v796 = vpop.permute.xlu0 %795
          %799 = vset.pattern.permute.xlu0 0
          %800 = vperm.xlu0 %799, %v582
          %v801 = vpop.permute.xlu0 %800
          %804 = vset.pattern.permute.xlu0 0
          %805 = vperm.xlu0 %804, %v583
          %v806 = vpop.permute.xlu0 %805
          %809 = vset.pattern.permute.xlu0 0
          %810 = vperm.xlu0 %809, %v584
          %v811 = vpop.permute.xlu0 %810
          %814 = vset.pattern.permute.xlu0 0
          %815 = vperm.xlu0 %814, %v585
          %v816 = vpop.permute.xlu0 %815
          %819 = vset.pattern.permute.xlu0 0
          %820 = vperm.xlu0 %819, %v586
          %v821 = vpop.permute.xlu0 %820
          %824 = vset.pattern.permute.xlu0 0
          %825 = vperm.xlu0 %824, %v587
          %v826 = vpop.permute.xlu0 %825
          %829 = vset.pattern.permute.xlu0 0
          %830 = vperm.xlu0 %829, %v588
          %v831 = vpop.permute.xlu0 %830
          %834 = vset.pattern.permute.xlu0 0
          %835 = vperm.xlu0 %834, %v589
          %v836 = vpop.permute.xlu0 %835
          %839 = vset.pattern.permute.xlu0 0
          %840 = vperm.xlu0 %839, %v590
          %v841 = vpop.permute.xlu0 %840
          %844 = vset.pattern.permute.xlu0 0
          %845 = vperm.xlu0 %844, %v591
          %v846 = vpop.permute.xlu0 %845
          %849 = vset.pattern.permute.xlu0 0
          %850 = vperm.xlu0 %849, %v592
          %v851 = vpop.permute.xlu0 %850
          %854 = vset.pattern.permute.xlu0 0
          %855 = vperm.xlu0 %854, %v593
          %v856 = vpop.permute.xlu0 %855
          %859 = vset.pattern.permute.xlu0 0
          %860 = vperm.xlu0 %859, %v594
          %v861 = vpop.permute.xlu0 %860
          %864 = vset.pattern.permute.xlu0 0
          %865 = vperm.xlu0 %864, %v595
          %v866 = vpop.permute.xlu0 %865
          %869 = vset.pattern.permute.xlu0 0
          %870 = vperm.xlu0 %869, %v596
          %v871 = vpop.permute.xlu0 %870
          %874 = vset.pattern.permute.xlu0 0
          %875 = vperm.xlu0 %874, %v597
          %v876 = vpop.permute.xlu0 %875
          %v878 = vmul.f32 %v486, %v601
          %v879 = vmul.f32 %v487, %v606
          %v880 = vmul.f32 %v488, %v611
          %v881 = vmul.f32 %v489, %v616
          %v882 = vmul.f32 %v490, %v621
          %v883 = vmul.f32 %v491, %v626
          %v884 = vmul.f32 %v492, %v631
          %v885 = vmul.f32 %v493, %v636
          %v886 = vmul.f32 %v494, %v641
          %v887 = vmul.f32 %v495, %v646
          %v888 = vmul.f32 %v496, %v651
          %v889 = vmul.f32 %v497, %v656
          %v890 = vmul.f32 %v498, %v661
          %v891 = vmul.f32 %v499, %v666
          %v892 = vmul.f32 %v500, %v671
          %v893 = vmul.f32 %v501, %v676
          %v894 = vmul.f32 %v502, %v681
          %v895 = vmul.f32 %v503, %v686
          %v896 = vmul.f32 %v504, %v691
          %v897 = vmul.f32 %v505, %v696
          %v898 = vmul.f32 %v506, %v701
          %v899 = vmul.f32 %v507, %v706
          %v900 = vmul.f32 %v508, %v711
          %v901 = vmul.f32 %v509, %v716
          %v902 = vmul.f32 %v510, %v721
          %v903 = vmul.f32 %v511, %v726
          %v904 = vmul.f32 %v512, %v731
          %v905 = vmul.f32 %v513, %v736
          %v906 = vmul.f32 %v514, %v741
          %v907 = vmul.f32 %v515, %v746
          %v908 = vmul.f32 %v516, %v751
          %v909 = vmul.f32 %v517, %v756
          %v910 = vmul.f32 %v518, %v761
          %v911 = vmul.f32 %v519, %v766
          %v912 = vmul.f32 %v520, %v771
          %v913 = vmul.f32 %v521, %v776
          %v914 = vmul.f32 %v522, %v781
          %v915 = vmul.f32 %v523, %v786
          %v916 = vmul.f32 %v524, %v791
          %v917 = vmul.f32 %v525, %v796
          %v918 = vmul.f32 %v526, %v801
          %v919 = vmul.f32 %v527, %v806
          %v920 = vmul.f32 %v528, %v811
          %v921 = vmul.f32 %v529, %v816
          %v922 = vmul.f32 %v530, %v821
          %v923 = vmul.f32 %v531, %v826
          %v924 = vmul.f32 %v532, %v831
          %v925 = vmul.f32 %v533, %v836
          %v926 = vmul.f32 %v534, %v841
          %v927 = vmul.f32 %v535, %v846
          %v928 = vmul.f32 %v536, %v851
          %v929 = vmul.f32 %v537, %v856
          %v930 = vmul.f32 %v538, %v861
          %v931 = vmul.f32 %v539, %v866
          %v932 = vmul.f32 %v540, %v871
          %v933 = vmul.f32 %v541, %v876
          %v934 = vpack.c.bf16 %v879, %v878
          %v935 = vpack.c.bf16 %v881, %v880
          %v936 = vpack.c.bf16 %v883, %v882
          %v937 = vpack.c.bf16 %v885, %v884
          %v938 = vpack.c.bf16 %v887, %v886
          %v939 = vpack.c.bf16 %v889, %v888
          %v940 = vpack.c.bf16 %v891, %v890
          %v941 = vpack.c.bf16 %v893, %v892
          %v942 = vpack.c.bf16 %v895, %v894
          %v943 = vpack.c.bf16 %v897, %v896
          %v944 = vpack.c.bf16 %v899, %v898
          %v945 = vpack.c.bf16 %v901, %v900
          %v946 = vpack.c.bf16 %v903, %v902
          %v947 = vpack.c.bf16 %v905, %v904
          %v948 = vpack.c.bf16 %v907, %v906
          %v949 = vpack.c.bf16 %v909, %v908
          %v950 = vpack.c.bf16 %v911, %v910
          %v951 = vpack.c.bf16 %v913, %v912
          %v952 = vpack.c.bf16 %v915, %v914
          %v953 = vpack.c.bf16 %v917, %v916
          %v954 = vpack.c.bf16 %v919, %v918
          %v955 = vpack.c.bf16 %v921, %v920
          %v956 = vpack.c.bf16 %v923, %v922
          %v957 = vpack.c.bf16 %v925, %v924
          %v958 = vpack.c.bf16 %v927, %v926
          %v959 = vpack.c.bf16 %v929, %v928
          %v960 = vpack.c.bf16 %v931, %v930
          %v961 = vpack.c.bf16 %v933, %v932
          %v990 = vunpack.c.l.b16 %v934
          %v991 = vunpack.c.h.b16 %v934
          %v992 = vunpack.c.l.b16 %v935
          %v993 = vunpack.c.h.b16 %v935
          %v994 = vunpack.c.l.b16 %v936
          %v995 = vunpack.c.h.b16 %v936
          %v996 = vunpack.c.l.b16 %v937
          %v997 = vunpack.c.h.b16 %v937
          %v998 = vunpack.c.l.b16 %v938
          %v999 = vunpack.c.h.b16 %v938
          %v1000 = vunpack.c.l.b16 %v939
          %v1001 = vunpack.c.h.b16 %v939
          %v1002 = vunpack.c.l.b16 %v940
          %v1003 = vunpack.c.h.b16 %v940
          %v1004 = vunpack.c.l.b16 %v941
          %v1005 = vunpack.c.h.b16 %v941
          %v1006 = vunpack.c.l.b16 %v942
          %v1007 = vunpack.c.h.b16 %v942
          %v1008 = vunpack.c.l.b16 %v943
          %v1009 = vunpack.c.h.b16 %v943
          %v1010 = vunpack.c.l.b16 %v944
          %v1011 = vunpack.c.h.b16 %v944
          %v1012 = vunpack.c.l.b16 %v945
          %v1013 = vunpack.c.h.b16 %v945
          %v1014 = vunpack.c.l.b16 %v946
          %v1015 = vunpack.c.h.b16 %v946
          %v1016 = vunpack.c.l.b16 %v947
          %v1017 = vunpack.c.h.b16 %v947
          %v1018 = vunpack.c.l.b16 %v948
          %v1019 = vunpack.c.h.b16 %v948
          %v1020 = vunpack.c.l.b16 %v949
          %v1021 = vunpack.c.h.b16 %v949
          %v1022 = vunpack.c.l.b16 %v950
          %v1023 = vunpack.c.h.b16 %v950
          %v1024 = vunpack.c.l.b16 %v951
          %v1025 = vunpack.c.h.b16 %v951
          %v1026 = vunpack.c.l.b16 %v952
          %v1027 = vunpack.c.h.b16 %v952
          %v1028 = vunpack.c.l.b16 %v953
          %v1029 = vunpack.c.h.b16 %v953
          %v1030 = vunpack.c.l.b16 %v954
          %v1031 = vunpack.c.h.b16 %v954
          %v1032 = vunpack.c.l.b16 %v955
          %v1033 = vunpack.c.h.b16 %v955
          %v1034 = vunpack.c.l.b16 %v956
          %v1035 = vunpack.c.h.b16 %v956
          %v1036 = vunpack.c.l.b16 %v957
          %v1037 = vunpack.c.h.b16 %v957
          %v1038 = vunpack.c.l.b16 %v958
          %v1039 = vunpack.c.h.b16 %v958
          %v1040 = vunpack.c.l.b16 %v959
          %v1041 = vunpack.c.h.b16 %v959
          %v1042 = vunpack.c.l.b16 %v960
          %v1043 = vunpack.c.h.b16 %v960
          %v1044 = vunpack.c.l.b16 %v961
          %v1045 = vunpack.c.h.b16 %v961
          %v1046 = vpack.c.b16 %v990, %v990
          %v1047 = vpack.c.b16 %v991, %v991
          %v1048 = vpack.c.b16 %v992, %v992
          %v1049 = vpack.c.b16 %v993, %v993
          %v1050 = vpack.c.b16 %v994, %v994
          %v1051 = vpack.c.b16 %v995, %v995
          %v1052 = vpack.c.b16 %v996, %v996
          %v1053 = vpack.c.b16 %v997, %v997
          %v1054 = vpack.c.b16 %v998, %v998
          %v1055 = vpack.c.b16 %v999, %v999
          %v1056 = vpack.c.b16 %v1000, %v1000
          %v1057 = vpack.c.b16 %v1001, %v1001
          %v1058 = vpack.c.b16 %v1002, %v1002
          %v1059 = vpack.c.b16 %v1003, %v1003
          %v1060 = vpack.c.b16 %v1004, %v1004
          %v1061 = vpack.c.b16 %v1005, %v1005
          %v1062 = vpack.c.b16 %v1006, %v1006
          %v1063 = vpack.c.b16 %v1007, %v1007
          %v1064 = vpack.c.b16 %v1008, %v1008
          %v1065 = vpack.c.b16 %v1009, %v1009
          %v1066 = vpack.c.b16 %v1010, %v1010
          %v1067 = vpack.c.b16 %v1011, %v1011
          %v1068 = vpack.c.b16 %v1012, %v1012
          %v1069 = vpack.c.b16 %v1013, %v1013
          %v1070 = vpack.c.b16 %v1014, %v1014
          %v1071 = vpack.c.b16 %v1015, %v1015
          %v1072 = vpack.c.b16 %v1016, %v1016
          %v1073 = vpack.c.b16 %v1017, %v1017
          %v1074 = vpack.c.b16 %v1018, %v1018
          %v1075 = vpack.c.b16 %v1019, %v1019
          %v1076 = vpack.c.b16 %v1020, %v1020
          %v1077 = vpack.c.b16 %v1021, %v1021
          %v1078 = vpack.c.b16 %v1022, %v1022
          %v1079 = vpack.c.b16 %v1023, %v1023
          %v1080 = vpack.c.b16 %v1024, %v1024
          %v1081 = vpack.c.b16 %v1025, %v1025
          %v1082 = vpack.c.b16 %v1026, %v1026
          %v1083 = vpack.c.b16 %v1027, %v1027
          %v1084 = vpack.c.b16 %v1028, %v1028
          %v1085 = vpack.c.b16 %v1029, %v1029
          %v1086 = vpack.c.b16 %v1030, %v1030
          %v1087 = vpack.c.b16 %v1031, %v1031
          %v1088 = vpack.c.b16 %v1032, %v1032
          %v1089 = vpack.c.b16 %v1033, %v1033
          %v1090 = vpack.c.b16 %v1034, %v1034
          %v1091 = vpack.c.b16 %v1035, %v1035
          %v1092 = vpack.c.b16 %v1036, %v1036
          %v1093 = vpack.c.b16 %v1037, %v1037
          %v1094 = vpack.c.b16 %v1038, %v1038
          %v1095 = vpack.c.b16 %v1039, %v1039
          %v1096 = vpack.c.b16 %v1040, %v1040
          %v1097 = vpack.c.b16 %v1041, %v1041
          %v1098 = vpack.c.b16 %v1042, %v1042
          %v1099 = vpack.c.b16 %v1043, %v1043
          %v1100 = vpack.c.b16 %v1044, %v1044
          %v1101 = vpack.c.b16 %v1045, %v1045
          %vm1158 = vcmask 519168
          %1159 = vst.msk [vmem:[#allocation2] sm:$0xf] %vm1158, %v1046
          %1160 = vst.msk [vmem:[#allocation2 + $0x4] sm:$0xf] %vm1158, %v1047
          %1161 = vst.msk [vmem:[#allocation2 + $0x8] sm:$0xf] %vm1158, %v1048
          %1162 = vst.msk [vmem:[#allocation2 + $0xc] sm:$0xf] %vm1158, %v1049
          %1163 = vst.msk [vmem:[#allocation2 + $0x10] sm:$0xf] %vm1158, %v1050
          %1164 = vst.msk [vmem:[#allocation2 + $0x14] sm:$0xf] %vm1158, %v1051
          %1165 = vst.msk [vmem:[#allocation2 + $0x18] sm:$0xf] %vm1158, %v1052
          %1166 = vst.msk [vmem:[#allocation2 + $0x1c] sm:$0xf] %vm1158, %v1053
          %1167 = vst.msk [vmem:[#allocation2 + $0x20] sm:$0xf] %vm1158, %v1054
          %1168 = vst.msk [vmem:[#allocation2 + $0x24] sm:$0xf] %vm1158, %v1055
          %1169 = vst.msk [vmem:[#allocation2 + $0x28] sm:$0xf] %vm1158, %v1056
          %1170 = vst.msk [vmem:[#allocation2 + $0x2c] sm:$0xf] %vm1158, %v1057
          %1171 = vst.msk [vmem:[#allocation2 + $0x30] sm:$0xf] %vm1158, %v1058
          %1172 = vst.msk [vmem:[#allocation2 + $0x34] sm:$0xf] %vm1158, %v1059
          %1173 = vst.msk [vmem:[#allocation2 + $0x38] sm:$0xf] %vm1158, %v1060
          %1174 = vst.msk [vmem:[#allocation2 + $0x3c] sm:$0xf] %vm1158, %v1061
          %1175 = vst.msk [vmem:[#allocation2 + $0x40] sm:$0xf] %vm1158, %v1062
          %1176 = vst.msk [vmem:[#allocation2 + $0x44] sm:$0xf] %vm1158, %v1063
          %1177 = vst.msk [vmem:[#allocation2 + $0x48] sm:$0xf] %vm1158, %v1064
          %1178 = vst.msk [vmem:[#allocation2 + $0x4c] sm:$0xf] %vm1158, %v1065
          %1179 = vst.msk [vmem:[#allocation2 + $0x50] sm:$0xf] %vm1158, %v1066
          %1180 = vst.msk [vmem:[#allocation2 + $0x54] sm:$0xf] %vm1158, %v1067
          %1181 = vst.msk [vmem:[#allocation2 + $0x58] sm:$0xf] %vm1158, %v1068
          %1182 = vst.msk [vmem:[#allocation2 + $0x5c] sm:$0xf] %vm1158, %v1069
          %1183 = vst.msk [vmem:[#allocation2 + $0x60] sm:$0xf] %vm1158, %v1070
          %1184 = vst.msk [vmem:[#allocation2 + $0x64] sm:$0xf] %vm1158, %v1071
          %1185 = vst.msk [vmem:[#allocation2 + $0x68] sm:$0xf] %vm1158, %v1072
          %1186 = vst.msk [vmem:[#allocation2 + $0x6c] sm:$0xf] %vm1158, %v1073
          %1187 = vst.msk [vmem:[#allocation2 + $0x70] sm:$0xf] %vm1158, %v1074
          %1188 = vst.msk [vmem:[#allocation2 + $0x74] sm:$0xf] %vm1158, %v1075
          %1189 = vst.msk [vmem:[#allocation2 + $0x78] sm:$0xf] %vm1158, %v1076
          %1190 = vst.msk [vmem:[#allocation2 + $0x7c] sm:$0xf] %vm1158, %v1077
          %1191 = vst.msk [vmem:[#allocation2 + $0x80] sm:$0xf] %vm1158, %v1078
          %1192 = vst.msk [vmem:[#allocation2 + $0x84] sm:$0xf] %vm1158, %v1079
          %1193 = vst.msk [vmem:[#allocation2 + $0x88] sm:$0xf] %vm1158, %v1080
          %1194 = vst.msk [vmem:[#allocation2 + $0x8c] sm:$0xf] %vm1158, %v1081
          %1195 = vst.msk [vmem:[#allocation2 + $0x90] sm:$0xf] %vm1158, %v1082
          %1196 = vst.msk [vmem:[#allocation2 + $0x94] sm:$0xf] %vm1158, %v1083
          %1197 = vst.msk [vmem:[#allocation2 + $0x98] sm:$0xf] %vm1158, %v1084
          %1198 = vst.msk [vmem:[#allocation2 + $0x9c] sm:$0xf] %vm1158, %v1085
          %1199 = vst.msk [vmem:[#allocation2 + $0xa0] sm:$0xf] %vm1158, %v1086
          %1200 = vst.msk [vmem:[#allocation2 + $0xa4] sm:$0xf] %vm1158, %v1087
          %1201 = vst.msk [vmem:[#allocation2 + $0xa8] sm:$0xf] %vm1158, %v1088
          %1202 = vst.msk [vmem:[#allocation2 + $0xac] sm:$0xf] %vm1158, %v1089
          %1203 = vst.msk [vmem:[#allocation2 + $0xb0] sm:$0xf] %vm1158, %v1090
          %1204 = vst.msk [vmem:[#allocation2 + $0xb4] sm:$0xf] %vm1158, %v1091
          %1205 = vst.msk [vmem:[#allocation2 + $0xb8] sm:$0xf] %vm1158, %v1092
          %1206 = vst.msk [vmem:[#allocation2 + $0xbc] sm:$0xf] %vm1158, %v1093
          %1207 = vst.msk [vmem:[#allocation2 + $0xc0] sm:$0xf] %vm1158, %v1094
          %1208 = vst.msk [vmem:[#allocation2 + $0xc4] sm:$0xf] %vm1158, %v1095
          %1209 = vst.msk [vmem:[#allocation2 + $0xc8] sm:$0xf] %vm1158, %v1096
          %1210 = vst.msk [vmem:[#allocation2 + $0xcc] sm:$0xf] %vm1158, %v1097
          %1211 = vst.msk [vmem:[#allocation2 + $0xd0] sm:$0xf] %vm1158, %v1098
          %1212 = vst.msk [vmem:[#allocation2 + $0xd4] sm:$0xf] %vm1158, %v1099
          %1213 = vst.msk [vmem:[#allocation2 + $0xd8] sm:$0xf] %vm1158, %v1100
          %1214 = vst.msk [vmem:[#allocation2 + $0xdc] sm:$0xf] %vm1158, %v1101
        $region48: #{tpu_custom_call.1} parent=43 // pred_fallthru
          _
        %v1215 = vld [vmem:[%s411] sm:$0xff]
        %v1216 = vld [vmem:[%s411 + $0x8] sm:$0xff]
        %v1217 = vld [vmem:[%s411 + $0x10] sm:$0xff]
        %v1218 = vld [vmem:[%s411 + $0x18] sm:$0xff]
        %v1219 = vld [vmem:[%s411 + $0x20] sm:$0xff]
        %v1220 = vld [vmem:[%s411 + $0x28] sm:$0xff]
        %v1221 = vld [vmem:[%s411 + $0x30] sm:$0xff]
        %v1222 = vld [vmem:[%s411 + $0x38] sm:$0xff]
        %v1223 = vld [vmem:[%s411 + $0x40] sm:$0xff]
        %v1224 = vld [vmem:[%s411 + $0x48] sm:$0xff]
        %v1225 = vld [vmem:[%s411 + $0x50] sm:$0xff]
        %v1226 = vld [vmem:[%s411 + $0x58] sm:$0xff]
        %v1227 = vld [vmem:[%s411 + $0x60] sm:$0xff]
        %v1228 = vld [vmem:[%s411 + $0x68] sm:$0xff]
        %v1229 = vld [vmem:[%s411 + $0x70] sm:$0xff]
        %v1230 = vld [vmem:[%s411 + $0x78] sm:$0xff]
        %v1231 = vld [vmem:[%s411 + $0x80] sm:$0xff]
        %v1232 = vld [vmem:[%s411 + $0x88] sm:$0xff]
        %v1233 = vld [vmem:[%s411 + $0x90] sm:$0xff]
        %v1234 = vld [vmem:[%s411 + $0x98] sm:$0xff]
        %v1235 = vld [vmem:[%s411 + $0xa0] sm:$0xff]
        %v1236 = vld [vmem:[%s411 + $0xa8] sm:$0xff]
        %v1237 = vld [vmem:[%s411 + $0xb0] sm:$0xff]
        %v1238 = vld [vmem:[%s411 + $0xb8] sm:$0xff]
        %v1239 = vld [vmem:[%s411 + $0xc0] sm:$0xff]
        %v1240 = vld [vmem:[%s411 + $0xc8] sm:$0xff]
        %v1241 = vld [vmem:[%s411 + $0xd0] sm:$0xff]
        %v1242 = vld [vmem:[%s411 + $0xd8] sm:$0xff]
        %v1243 = vld [vmem:[%s411 + $0xe0] sm:$0xff]
        %v1244 = vld [vmem:[%s411 + $0xe8] sm:$0xff]
        %v1245 = vld [vmem:[%s411 + $0xf0] sm:$0xff]
        %v1246 = vld [vmem:[%s411 + $0xf8] sm:$0xff]
        %v1247 = vld [vmem:[#allocation2] sm:$0xf]
        %v1248 = vld [vmem:[#allocation2 + $0x4] sm:$0xf]
        %v1249 = vld [vmem:[#allocation2 + $0x8] sm:$0xf]
        %v1250 = vld [vmem:[#allocation2 + $0xc] sm:$0xf]
        %v1251 = vld [vmem:[#allocation2 + $0x10] sm:$0xf]
        %v1252 = vld [vmem:[#allocation2 + $0x14] sm:$0xf]
        %v1253 = vld [vmem:[#allocation2 + $0x18] sm:$0xf]
        %v1254 = vld [vmem:[#allocation2 + $0x1c] sm:$0xf]
        %v1255 = vld [vmem:[#allocation2 + $0x20] sm:$0xf]
        %v1256 = vld [vmem:[#allocation2 + $0x24] sm:$0xf]
        %v1257 = vld [vmem:[#allocation2 + $0x28] sm:$0xf]
        %v1258 = vld [vmem:[#allocation2 + $0x2c] sm:$0xf]
        %v1259 = vld [vmem:[#allocation2 + $0x30] sm:$0xf]
        %v1260 = vld [vmem:[#allocation2 + $0x34] sm:$0xf]
        %v1261 = vld [vmem:[#allocation2 + $0x38] sm:$0xf]
        %v1262 = vld [vmem:[#allocation2 + $0x3c] sm:$0xf]
        %v1263 = vld [vmem:[#allocation2 + $0x40] sm:$0xf]
        %v1264 = vld [vmem:[#allocation2 + $0x44] sm:$0xf]
        %v1265 = vld [vmem:[#allocation2 + $0x48] sm:$0xf]
        %v1266 = vld [vmem:[#allocation2 + $0x4c] sm:$0xf]
        %v1267 = vld [vmem:[#allocation2 + $0x50] sm:$0xf]
        %v1268 = vld [vmem:[#allocation2 + $0x54] sm:$0xf]
        %v1269 = vld [vmem:[#allocation2 + $0x58] sm:$0xf]
        %v1270 = vld [vmem:[#allocation2 + $0x5c] sm:$0xf]
        %v1271 = vld [vmem:[#allocation2 + $0x60] sm:$0xf]
        %v1272 = vld [vmem:[#allocation2 + $0x64] sm:$0xf]
        %v1273 = vld [vmem:[#allocation2 + $0x68] sm:$0xf]
        %v1274 = vld [vmem:[#allocation2 + $0x6c] sm:$0xf]
        %v1275 = vld [vmem:[#allocation2 + $0x70] sm:$0xf]
        %v1276 = vld [vmem:[#allocation2 + $0x74] sm:$0xf]
        %v1277 = vld [vmem:[#allocation2 + $0x78] sm:$0xf]
        %v1278 = vld [vmem:[#allocation2 + $0x7c] sm:$0xf]
        %v1279 = vld [vmem:[#allocation2 + $0x80] sm:$0xf]
        %v1280 = vld [vmem:[#allocation2 + $0x84] sm:$0xf]
        %v1281 = vld [vmem:[#allocation2 + $0x88] sm:$0xf]
        %v1282 = vld [vmem:[#allocation2 + $0x8c] sm:$0xf]
        %v1283 = vld [vmem:[#allocation2 + $0x90] sm:$0xf]
        %v1284 = vld [vmem:[#allocation2 + $0x94] sm:$0xf]
        %v1285 = vld [vmem:[#allocation2 + $0x98] sm:$0xf]
        %v1286 = vld [vmem:[#allocation2 + $0x9c] sm:$0xf]
        %v1287 = vld [vmem:[#allocation2 + $0xa0] sm:$0xf]
        %v1288 = vld [vmem:[#allocation2 + $0xa4] sm:$0xf]
        %v1289 = vld [vmem:[#allocation2 + $0xa8] sm:$0xf]
        %v1290 = vld [vmem:[#allocation2 + $0xac] sm:$0xf]
        %v1291 = vld [vmem:[#allocation2 + $0xb0] sm:$0xf]
        %v1292 = vld [vmem:[#allocation2 + $0xb4] sm:$0xf]
        %v1293 = vld [vmem:[#allocation2 + $0xb8] sm:$0xf]
        %v1294 = vld [vmem:[#allocation2 + $0xbc] sm:$0xf]
        %v1295 = vld [vmem:[#allocation2 + $0xc0] sm:$0xf]
        %v1296 = vld [vmem:[#allocation2 + $0xc4] sm:$0xf]
        %v1297 = vld [vmem:[#allocation2 + $0xc8] sm:$0xf]
        %v1298 = vld [vmem:[#allocation2 + $0xcc] sm:$0xf]
        %v1299 = vld [vmem:[#allocation2 + $0xd0] sm:$0xf]
        %v1300 = vld [vmem:[#allocation2 + $0xd4] sm:$0xf]
        %v1301 = vld [vmem:[#allocation2 + $0xd8] sm:$0xf]
        %v1302 = vld [vmem:[#allocation2 + $0xdc] sm:$0xf]
        %v1335 = vunpack.c.l.b16 %v1215
        %v1336 = vunpack.c.h.b16 %v1215
        %v1337 = vunpack.c.l.b16 %v1216
        %v1338 = vunpack.c.h.b16 %v1216
        %v1339 = vunpack.c.l.b16 %v1217
        %v1340 = vunpack.c.h.b16 %v1217
        %v1341 = vunpack.c.l.b16 %v1218
        %v1342 = vunpack.c.h.b16 %v1218
        %v1343 = vunpack.c.l.b16 %v1219
        %v1344 = vunpack.c.h.b16 %v1219
        %v1345 = vunpack.c.l.b16 %v1220
        %v1346 = vunpack.c.h.b16 %v1220
        %v1347 = vunpack.c.l.b16 %v1221
        %v1348 = vunpack.c.h.b16 %v1221
        %v1349 = vunpack.c.l.b16 %v1222
        %v1350 = vunpack.c.h.b16 %v1222
        %v1351 = vunpack.c.l.b16 %v1223
        %v1352 = vunpack.c.h.b16 %v1223
        %v1353 = vunpack.c.l.b16 %v1224
        %v1354 = vunpack.c.h.b16 %v1224
        %v1355 = vunpack.c.l.b16 %v1225
        %v1356 = vunpack.c.h.b16 %v1225
        %v1357 = vunpack.c.l.b16 %v1226
        %v1358 = vunpack.c.h.b16 %v1226
        %v1359 = vunpack.c.l.b16 %v1227
        %v1360 = vunpack.c.h.b16 %v1227
        %v1361 = vunpack.c.l.b16 %v1228
        %v1362 = vunpack.c.h.b16 %v1228
        %v1363 = vunpack.c.l.b16 %v1229
        %v1364 = vunpack.c.h.b16 %v1229
        %v1365 = vunpack.c.l.b16 %v1230
        %v1366 = vunpack.c.h.b16 %v1230
        %v1367 = vunpack.c.l.b16 %v1231
        %v1368 = vunpack.c.h.b16 %v1231
        %v1369 = vunpack.c.l.b16 %v1232
        %v1370 = vunpack.c.h.b16 %v1232
        %v1371 = vunpack.c.l.b16 %v1233
        %v1372 = vunpack.c.h.b16 %v1233
        %v1373 = vunpack.c.l.b16 %v1234
        %v1374 = vunpack.c.h.b16 %v1234
        %v1375 = vunpack.c.l.b16 %v1235
        %v1376 = vunpack.c.h.b16 %v1235
        %v1377 = vunpack.c.l.b16 %v1236
        %v1378 = vunpack.c.h.b16 %v1236
        %v1379 = vunpack.c.l.b16 %v1237
        %v1380 = vunpack.c.h.b16 %v1237
        %v1381 = vunpack.c.l.b16 %v1238
        %v1382 = vunpack.c.h.b16 %v1238
        %v1383 = vunpack.c.l.b16 %v1239
        %v1384 = vunpack.c.h.b16 %v1239
        %v1385 = vunpack.c.l.b16 %v1240
        %v1386 = vunpack.c.h.b16 %v1240
        %v1387 = vunpack.c.l.b16 %v1241
        %v1388 = vunpack.c.h.b16 %v1241
        %v1389 = vunpack.c.l.b16 %v1242
        %v1390 = vunpack.c.h.b16 %v1242
        %v1391 = vunpack.c.l.b16 %v1243
        %v1392 = vunpack.c.h.b16 %v1243
        %v1393 = vunpack.c.l.b16 %v1244
        %v1394 = vunpack.c.h.b16 %v1244
        %v1395 = vunpack.c.l.b16 %v1245
        %v1396 = vunpack.c.h.b16 %v1245
        %v1397 = vunpack.c.l.b16 %v1246
        %v1398 = vunpack.c.h.b16 %v1246
        %v1399 = vpack.c.b16 %v1339, %v1335
        %v1400 = vpack.c.b16 %v1340, %v1336
        %v1401 = vpack.c.b16 %v1341, %v1337
        %v1402 = vpack.c.b16 %v1342, %v1338
        %v1403 = vpack.c.b16 %v1347, %v1343
        %v1404 = vpack.c.b16 %v1348, %v1344
        %v1405 = vpack.c.b16 %v1349, %v1345
        %v1406 = vpack.c.b16 %v1350, %v1346
        %v1407 = vpack.c.b16 %v1355, %v1351
        %v1408 = vpack.c.b16 %v1356, %v1352
        %v1409 = vpack.c.b16 %v1357, %v1353
        %v1410 = vpack.c.b16 %v1358, %v1354
        %v1411 = vpack.c.b16 %v1363, %v1359
        %v1412 = vpack.c.b16 %v1364, %v1360
        %v1413 = vpack.c.b16 %v1365, %v1361
        %v1414 = vpack.c.b16 %v1366, %v1362
        %v1415 = vpack.c.b16 %v1371, %v1367
        %v1416 = vpack.c.b16 %v1372, %v1368
        %v1417 = vpack.c.b16 %v1373, %v1369
        %v1418 = vpack.c.b16 %v1374, %v1370
        %v1419 = vpack.c.b16 %v1379, %v1375
        %v1420 = vpack.c.b16 %v1380, %v1376
        %v1421 = vpack.c.b16 %v1381, %v1377
        %v1422 = vpack.c.b16 %v1382, %v1378
        %v1423 = vpack.c.b16 %v1387, %v1383
        %v1424 = vpack.c.b16 %v1388, %v1384
        %v1425 = vpack.c.b16 %v1389, %v1385
        %v1426 = vpack.c.b16 %v1390, %v1386
        %v1427 = vpack.c.b16 %v1395, %v1391
        %v1428 = vpack.c.b16 %v1396, %v1392
        %v1429 = vpack.c.b16 %v1397, %v1393
        %v1430 = vpack.c.b16 %v1398, %v1394
        %v1511 = vunpack.c.l.b16 %v1247
        %v1512 = vunpack.c.l.b16 %v1248
        %v1513 = vunpack.c.l.b16 %v1249
        %v1514 = vunpack.c.l.b16 %v1250
        %v1515 = vunpack.c.l.b16 %v1251
        %v1516 = vunpack.c.l.b16 %v1252
        %v1517 = vunpack.c.l.b16 %v1253
        %v1518 = vunpack.c.l.b16 %v1254
        %v1519 = vunpack.c.l.b16 %v1255
        %v1520 = vunpack.c.l.b16 %v1256
        %v1521 = vunpack.c.l.b16 %v1257
        %v1522 = vunpack.c.l.b16 %v1258
        %v1523 = vunpack.c.l.b16 %v1259
        %v1524 = vunpack.c.l.b16 %v1260
        %v1525 = vunpack.c.l.b16 %v1261
        %v1526 = vunpack.c.l.b16 %v1262
        %v1527 = vunpack.c.l.b16 %v1263
        %v1528 = vunpack.c.l.b16 %v1264
        %v1529 = vunpack.c.l.b16 %v1265
        %v1530 = vunpack.c.l.b16 %v1266
        %v1531 = vunpack.c.l.b16 %v1267
        %v1532 = vunpack.c.l.b16 %v1268
        %v1533 = vunpack.c.l.b16 %v1269
        %v1534 = vunpack.c.l.b16 %v1270
        %v1535 = vunpack.c.l.b16 %v1271
        %v1536 = vunpack.c.l.b16 %v1272
        %v1537 = vunpack.c.l.b16 %v1273
        %v1538 = vunpack.c.l.b16 %v1274
        %v1539 = vunpack.c.l.b16 %v1275
        %v1540 = vunpack.c.l.b16 %v1276
        %v1541 = vunpack.c.l.b16 %v1277
        %v1542 = vunpack.c.l.b16 %v1278
        %v1543 = vunpack.c.l.b16 %v1279
        %v1544 = vunpack.c.l.b16 %v1280
        %v1545 = vunpack.c.l.b16 %v1281
        %v1546 = vunpack.c.l.b16 %v1282
        %v1547 = vunpack.c.l.b16 %v1283
        %v1548 = vunpack.c.l.b16 %v1284
        %v1549 = vunpack.c.l.b16 %v1285
        %v1550 = vunpack.c.l.b16 %v1286
        %v1551 = vunpack.c.l.b16 %v1287
        %v1552 = vunpack.c.l.b16 %v1288
        %v1553 = vunpack.c.l.b16 %v1289
        %v1554 = vunpack.c.l.b16 %v1290
        %v1555 = vunpack.c.l.b16 %v1291
        %v1556 = vunpack.c.l.b16 %v1292
        %v1557 = vunpack.c.l.b16 %v1293
        %v1558 = vunpack.c.l.b16 %v1294
        %v1559 = vunpack.c.l.b16 %v1295
        %v1560 = vunpack.c.l.b16 %v1296
        %v1561 = vunpack.c.l.b16 %v1297
        %v1562 = vunpack.c.l.b16 %v1298
        %v1563 = vunpack.c.l.b16 %v1299
        %v1564 = vunpack.c.l.b16 %v1300
        %v1565 = vunpack.c.l.b16 %v1301
        %v1566 = vunpack.c.l.b16 %v1302
        %v1567 = vpack.c.b16 %v1512, %v1511
        %v1568 = vpack.c.b16 %v1514, %v1513
        %v1569 = vpack.c.b16 %v1516, %v1515
        %v1570 = vpack.c.b16 %v1518, %v1517
        %v1571 = vpack.c.b16 %v1520, %v1519
        %v1572 = vpack.c.b16 %v1522, %v1521
        %v1573 = vpack.c.b16 %v1524, %v1523
        %v1574 = vpack.c.b16 %v1526, %v1525
        %v1575 = vpack.c.b16 %v1528, %v1527
        %v1576 = vpack.c.b16 %v1530, %v1529
        %v1577 = vpack.c.b16 %v1532, %v1531
        %v1578 = vpack.c.b16 %v1534, %v1533
        %v1579 = vpack.c.b16 %v1536, %v1535
        %v1580 = vpack.c.b16 %v1538, %v1537
        %v1581 = vpack.c.b16 %v1540, %v1539
        %v1582 = vpack.c.b16 %v1542, %v1541
        %v1583 = vpack.c.b16 %v1544, %v1543
        %v1584 = vpack.c.b16 %v1546, %v1545
        %v1585 = vpack.c.b16 %v1548, %v1547
        %v1586 = vpack.c.b16 %v1550, %v1549
        %v1587 = vpack.c.b16 %v1552, %v1551
        %v1588 = vpack.c.b16 %v1554, %v1553
        %v1589 = vpack.c.b16 %v1556, %v1555
        %v1590 = vpack.c.b16 %v1558, %v1557
        %v1591 = vpack.c.b16 %v1560, %v1559
        %v1592 = vpack.c.b16 %v1562, %v1561
        %v1593 = vpack.c.b16 %v1564, %v1563
        %v1594 = vpack.c.b16 %v1566, %v1565
        %vm1623 = vcmask 523264
        %v1625 = vsel %vm1623, %v1402, 0
        %v1628 = vsel %vm1623, %v1406, 0
        %v1631 = vsel %vm1623, %v1410, 0
        %v1634 = vsel %vm1623, %v1414, 0
        %v1637 = vsel %vm1623, %v1418, 0
        %v1640 = vsel %vm1623, %v1422, 0
        %v1643 = vsel %vm1623, %v1426, 0
        %v1646 = vsel %vm1623, %v1430, 0
        %1648 = vmatprep.subr.bf16.mxu0 0
        %1649 = vmatpush1.bf16.msra.mxu0 %v1574
        %1650 = vmatprep.subr.bf16.mxu0 0
        %1651 = vmatpush1.bf16.msra.mxu0 %v1573
        %1652 = vmatprep.subr.bf16.mxu0 0
        %1653 = vmatpush1.bf16.msra.mxu0 %v1572
        %1654 = vmatprep.subr.bf16.mxu0 0
        %1655 = vmatpush1.bf16.msra.mxu0 %v1571
        %1656 = vmatprep.subr.bf16.mxu0 0
        %1657 = vmatpush1.bf16.msra.mxu0 %v1570
        %1658 = vmatprep.subr.bf16.mxu0 0
        %1659 = vmatpush1.bf16.msra.mxu0 %v1569
        %1660 = vmatprep.subr.bf16.mxu0 0
        %1661 = vmatpush1.bf16.msra.mxu0 %v1568
        %1662 = vmatprep.subr.bf16.mxu0 0
        %1663 = vmatpush1.bf16.msra.mxu0 %v1567
        %1664 = vmatprep.subr.bf16.mxu0 0
        %1665 = vmatpush2.bf16.msra.mxu0 %v1582
        %1666 = vmatprep.subr.bf16.mxu0 0
        %1667 = vmatpush2.bf16.msra.mxu0 %v1581
        %1668 = vmatprep.subr.bf16.mxu0 0
        %1669 = vmatpush2.bf16.msra.mxu0 %v1580
        %1670 = vmatprep.subr.bf16.mxu0 0
        %1671 = vmatpush2.bf16.msra.mxu0 %v1579
        %1672 = vmatprep.subr.bf16.mxu0 0
        %1673 = vmatpush2.bf16.msra.mxu0 %v1578
        %1674 = vmatprep.subr.bf16.mxu0 0
        %1675 = vmatpush2.bf16.msra.mxu0 %v1577
        %1676 = vmatprep.subr.bf16.mxu0 0
        %1677 = vmatpush2.bf16.msra.mxu0 %v1576
        %1678 = vmatprep.subr.bf16.mxu0 0
        %1679 = vmatpush2.bf16.msra.mxu0 %v1575
        %1680 = vmatprep.mubr.bf16.mxu0 %v1400
        %1681 = vmatmul.mubr.bf16.gmra.mxu0 %v1399
        %v1682 = vpop.f32.mrf.mxu0
        %v1683 = vadd.f32 0.0, %v1682
        %v1684 = vpop.f32.mrf.mxu0
        %v1685 = vpop.f32.mrf.mxu0
        %v1686 = vadd.f32 0.0, %v1685
        %v1687 = vpop.f32.mrf.mxu0
        %1688 = vmatprep.mubr.bf16.mxu0 %v1404
        %1689 = vmatmul.mubr.bf16.gmra.mxu0 %v1403
        %v1690 = vpop.f32.mrf.mxu0
        %v1691 = vadd.f32 0.0, %v1690
        %v1692 = vpop.f32.mrf.mxu0
        %v1693 = vpop.f32.mrf.mxu0
        %v1694 = vadd.f32 0.0, %v1693
        %v1695 = vpop.f32.mrf.mxu0
        %1696 = vmatprep.mubr.bf16.mxu0 %v1408
        %1697 = vmatmul.mubr.bf16.gmra.mxu0 %v1407
        %v1698 = vpop.f32.mrf.mxu0
        %v1699 = vadd.f32 0.0, %v1698
        %v1700 = vpop.f32.mrf.mxu0
        %v1701 = vpop.f32.mrf.mxu0
        %v1702 = vadd.f32 0.0, %v1701
        %v1703 = vpop.f32.mrf.mxu0
        %1704 = vmatprep.mubr.bf16.mxu0 %v1412
        %1705 = vmatmul.mubr.bf16.gmra.mxu0 %v1411
        %v1706 = vpop.f32.mrf.mxu0
        %v1707 = vadd.f32 0.0, %v1706
        %v1708 = vpop.f32.mrf.mxu0
        %v1709 = vpop.f32.mrf.mxu0
        %v1710 = vadd.f32 0.0, %v1709
        %v1711 = vpop.f32.mrf.mxu0
        %1712 = vmatprep.mubr.bf16.mxu0 %v1416
        %1713 = vmatmul.mubr.bf16.gmra.mxu0 %v1415
        %v1714 = vpop.f32.mrf.mxu0
        %v1715 = vadd.f32 0.0, %v1714
        %v1716 = vpop.f32.mrf.mxu0
        %v1717 = vpop.f32.mrf.mxu0
        %v1718 = vadd.f32 0.0, %v1717
        %v1719 = vpop.f32.mrf.mxu0
        %1720 = vmatprep.mubr.bf16.mxu0 %v1420
        %1721 = vmatmul.mubr.bf16.gmra.mxu0 %v1419
        %v1722 = vpop.f32.mrf.mxu0
        %v1723 = vadd.f32 0.0, %v1722
        %v1724 = vpop.f32.mrf.mxu0
        %v1725 = vpop.f32.mrf.mxu0
        %v1726 = vadd.f32 0.0, %v1725
        %v1727 = vpop.f32.mrf.mxu0
        %1728 = vmatprep.mubr.bf16.mxu0 %v1424
        %1729 = vmatmul.mubr.bf16.gmra.mxu0 %v1423
        %v1730 = vpop.f32.mrf.mxu0
        %v1731 = vadd.f32 0.0, %v1730
        %v1732 = vpop.f32.mrf.mxu0
        %v1733 = vpop.f32.mrf.mxu0
        %v1734 = vadd.f32 0.0, %v1733
        %v1735 = vpop.f32.mrf.mxu0
        %1736 = vmatprep.mubr.bf16.mxu0 %v1428
        %1737 = vmatmul.mubr.bf16.gmra.mxu0 %v1427
        %v1738 = vpop.f32.mrf.mxu0
        %v1739 = vadd.f32 0.0, %v1738
        %v1740 = vpop.f32.mrf.mxu0
        %v1741 = vpop.f32.mrf.mxu0
        %v1742 = vadd.f32 0.0, %v1741
        %v1743 = vpop.f32.mrf.mxu0
        %1744 = vdwg.mxu0
        %1745 = vmatprep.subr.bf16.mxu0 0
        %1746 = vmatpush1.bf16.msra.mxu0 %v1590
        %1747 = vmatprep.subr.bf16.mxu0 0
        %1748 = vmatpush1.bf16.msra.mxu0 %v1589
        %1749 = vmatprep.subr.bf16.mxu0 0
        %1750 = vmatpush1.bf16.msra.mxu0 %v1588
        %1751 = vmatprep.subr.bf16.mxu0 0
        %1752 = vmatpush1.bf16.msra.mxu0 %v1587
        %1753 = vmatprep.subr.bf16.mxu0 0
        %1754 = vmatpush1.bf16.msra.mxu0 %v1586
        %1755 = vmatprep.subr.bf16.mxu0 0
        %1756 = vmatpush1.bf16.msra.mxu0 %v1585
        %1757 = vmatprep.subr.bf16.mxu0 0
        %1758 = vmatpush1.bf16.msra.mxu0 %v1584
        %1759 = vmatprep.subr.bf16.mxu0 0
        %1760 = vmatpush1.bf16.msra.mxu0 %v1583
        %1761 = vmatprep.subr.bf16.mxu0 0
        %1762 = vmatpush2.bf16.msra.mxu0 0
        %1763 = vmatprep.subr.bf16.mxu0 0
        %1764 = vmatpush2.bf16.msra.mxu0 0
        %1765 = vmatprep.subr.bf16.mxu0 0
        %1766 = vmatpush2.bf16.msra.mxu0 0
        %1767 = vmatprep.subr.bf16.mxu0 0
        %1768 = vmatpush2.bf16.msra.mxu0 0
        %1769 = vmatprep.subr.bf16.mxu0 0
        %1770 = vmatpush2.bf16.msra.mxu0 %v1594
        %1771 = vmatprep.subr.bf16.mxu0 0
        %1772 = vmatpush2.bf16.msra.mxu0 %v1593
        %1773 = vmatprep.subr.bf16.mxu0 0
        %1774 = vmatpush2.bf16.msra.mxu0 %v1592
        %1775 = vmatprep.subr.bf16.mxu0 0
        %1776 = vmatpush2.bf16.msra.mxu0 %v1591
        %1777 = vmatprep.mubr.bf16.mxu0 %v1625
        %1778 = vmatmul.mubr.bf16.gmra.mxu0 %v1401
        %v1779 = vpop.f32.mrf.mxu0
        %v1780 = vadd.f32 %v1683, %v1779
        %v1781 = vpop.f32.mrf.mxu0
        %v1782 = vpop.f32.mrf.mxu0
        %v1783 = vadd.f32 %v1686, %v1782
        %v1784 = vpop.f32.mrf.mxu0
        %1785 = vmatprep.mubr.bf16.mxu0 %v1628
        %1786 = vmatmul.mubr.bf16.gmra.mxu0 %v1405
        %v1787 = vpop.f32.mrf.mxu0
        %v1788 = vadd.f32 %v1691, %v1787
        %v1789 = vpop.f32.mrf.mxu0
        %v1790 = vpop.f32.mrf.mxu0
        %v1791 = vadd.f32 %v1694, %v1790
        %v1792 = vpop.f32.mrf.mxu0
        %1793 = vmatprep.mubr.bf16.mxu0 %v1631
        %1794 = vmatmul.mubr.bf16.gmra.mxu0 %v1409
        %v1795 = vpop.f32.mrf.mxu0
        %v1796 = vadd.f32 %v1699, %v1795
        %v1797 = vpop.f32.mrf.mxu0
        %v1798 = vpop.f32.mrf.mxu0
        %v1799 = vadd.f32 %v1702, %v1798
        %v1800 = vpop.f32.mrf.mxu0
        %1801 = vmatprep.mubr.bf16.mxu0 %v1634
        %1802 = vmatmul.mubr.bf16.gmra.mxu0 %v1413
        %v1803 = vpop.f32.mrf.mxu0
        %v1804 = vadd.f32 %v1707, %v1803
        %v1805 = vpop.f32.mrf.mxu0
        %v1806 = vpop.f32.mrf.mxu0
        %v1807 = vadd.f32 %v1710, %v1806
        %v1808 = vpop.f32.mrf.mxu0
        %1809 = vmatprep.mubr.bf16.mxu0 %v1637
        %1810 = vmatmul.mubr.bf16.gmra.mxu0 %v1417
        %v1811 = vpop.f32.mrf.mxu0
        %v1812 = vadd.f32 %v1715, %v1811
        %v1813 = vpop.f32.mrf.mxu0
        %v1814 = vpop.f32.mrf.mxu0
        %v1815 = vadd.f32 %v1718, %v1814
        %v1816 = vpop.f32.mrf.mxu0
        %1817 = vmatprep.mubr.bf16.mxu0 %v1640
        %1818 = vmatmul.mubr.bf16.gmra.mxu0 %v1421
        %v1819 = vpop.f32.mrf.mxu0
        %v1820 = vadd.f32 %v1723, %v1819
        %v1821 = vpop.f32.mrf.mxu0
        %v1822 = vpop.f32.mrf.mxu0
        %v1823 = vadd.f32 %v1726, %v1822
        %v1824 = vpop.f32.mrf.mxu0
        %1825 = vmatprep.mubr.bf16.mxu0 %v1643
        %1826 = vmatmul.mubr.bf16.gmra.mxu0 %v1425
        %v1827 = vpop.f32.mrf.mxu0
        %v1828 = vadd.f32 %v1731, %v1827
        %v1829 = vpop.f32.mrf.mxu0
        %v1830 = vpop.f32.mrf.mxu0
        %v1831 = vadd.f32 %v1734, %v1830
        %v1832 = vpop.f32.mrf.mxu0
        %1833 = vmatprep.mubr.bf16.mxu0 %v1646
        %1834 = vmatmul.mubr.bf16.gmra.mxu0 %v1429
        %v1835 = vpop.f32.mrf.mxu0
        %v1836 = vadd.f32 %v1739, %v1835
        %v1837 = vpop.f32.mrf.mxu0
        %v1838 = vpop.f32.mrf.mxu0
        %v1839 = vadd.f32 %v1742, %v1838
        %v1840 = vpop.f32.mrf.mxu0
        %1841 = vdwg.mxu0
        %v1842 = vsel %vm1623, %v1780, 0.0
        %1843 = vadd.xlane.f32.xlu0 %v1842
        %v1844 = vpop.xlane.xlu0 %1843
        %v1845 = vsel %vm1623, %v1783, 0.0
        %1846 = vadd.xlane.f32.xlu0 %v1845
        %v1847 = vpop.xlane.xlu0 %1846
        %v1848 = vsel %vm1623, %v1788, 0.0
        %1849 = vadd.xlane.f32.xlu0 %v1848
        %v1850 = vpop.xlane.xlu0 %1849
        %v1851 = vsel %vm1623, %v1791, 0.0
        %1852 = vadd.xlane.f32.xlu0 %v1851
        %v1853 = vpop.xlane.xlu0 %1852
        %v1854 = vsel %vm1623, %v1796, 0.0
        %1855 = vadd.xlane.f32.xlu0 %v1854
        %v1856 = vpop.xlane.xlu0 %1855
        %v1857 = vsel %vm1623, %v1799, 0.0
        %1858 = vadd.xlane.f32.xlu0 %v1857
        %v1859 = vpop.xlane.xlu0 %1858
        %v1860 = vsel %vm1623, %v1804, 0.0
        %1861 = vadd.xlane.f32.xlu0 %v1860
        %v1862 = vpop.xlane.xlu0 %1861
        %v1863 = vsel %vm1623, %v1807, 0.0
        %1864 = vadd.xlane.f32.xlu0 %v1863
        %v1865 = vpop.xlane.xlu0 %1864
        %v1866 = vsel %vm1623, %v1812, 0.0
        %1867 = vadd.xlane.f32.xlu0 %v1866
        %v1868 = vpop.xlane.xlu0 %1867
        %v1869 = vsel %vm1623, %v1815, 0.0
        %1870 = vadd.xlane.f32.xlu0 %v1869
        %v1871 = vpop.xlane.xlu0 %1870
        %v1872 = vsel %vm1623, %v1820, 0.0
        %1873 = vadd.xlane.f32.xlu0 %v1872
        %v1874 = vpop.xlane.xlu0 %1873
        %v1875 = vsel %vm1623, %v1823, 0.0
        %1876 = vadd.xlane.f32.xlu0 %v1875
        %v1877 = vpop.xlane.xlu0 %1876
        %v1878 = vsel %vm1623, %v1828, 0.0
        %1879 = vadd.xlane.f32.xlu0 %v1878
        %v1880 = vpop.xlane.xlu0 %1879
        %v1881 = vsel %vm1623, %v1831, 0.0
        %1882 = vadd.xlane.f32.xlu0 %v1881
        %v1883 = vpop.xlane.xlu0 %1882
        %v1884 = vsel %vm1623, %v1836, 0.0
        %1885 = vadd.xlane.f32.xlu0 %v1884
        %v1886 = vpop.xlane.xlu0 %1885
        %v1887 = vsel %vm1623, %v1839, 0.0
        %1888 = vadd.xlane.f32.xlu0 %v1887
        %v1889 = vpop.xlane.xlu0 %1888
        %v1890 = vmul.f32 %v1780, %v1780
        %v1891 = vmul.f32 %v1783, %v1783
        %v1892 = vmul.f32 %v1788, %v1788
        %v1893 = vmul.f32 %v1791, %v1791
        %v1894 = vmul.f32 %v1796, %v1796
        %v1895 = vmul.f32 %v1799, %v1799
        %v1896 = vmul.f32 %v1804, %v1804
        %v1897 = vmul.f32 %v1807, %v1807
        %v1898 = vmul.f32 %v1812, %v1812
        %v1899 = vmul.f32 %v1815, %v1815
        %v1900 = vmul.f32 %v1820, %v1820
        %v1901 = vmul.f32 %v1823, %v1823
        %v1902 = vmul.f32 %v1828, %v1828
        %v1903 = vmul.f32 %v1831, %v1831
        %v1904 = vmul.f32 %v1836, %v1836
        %v1905 = vmul.f32 %v1839, %v1839
        %v1906 = vsel %vm1623, %v1890, 0.0
        %1907 = vadd.xlane.f32.xlu0 %v1906
        %v1908 = vpop.xlane.xlu0 %1907
        %v1909 = vsel %vm1623, %v1891, 0.0
        %1910 = vadd.xlane.f32.xlu0 %v1909
        %v1911 = vpop.xlane.xlu0 %1910
        %v1912 = vsel %vm1623, %v1892, 0.0
        %1913 = vadd.xlane.f32.xlu0 %v1912
        %v1914 = vpop.xlane.xlu0 %1913
        %v1915 = vsel %vm1623, %v1893, 0.0
        %1916 = vadd.xlane.f32.xlu0 %v1915
        %v1917 = vpop.xlane.xlu0 %1916
        %v1918 = vsel %vm1623, %v1894, 0.0
        %1919 = vadd.xlane.f32.xlu0 %v1918
        %v1920 = vpop.xlane.xlu0 %1919
        %v1921 = vsel %vm1623, %v1895, 0.0
        %1922 = vadd.xlane.f32.xlu0 %v1921
        %v1923 = vpop.xlane.xlu0 %1922
        %v1924 = vsel %vm1623, %v1896, 0.0
        %1925 = vadd.xlane.f32.xlu0 %v1924
        %v1926 = vpop.xlane.xlu0 %1925
        %v1927 = vsel %vm1623, %v1897, 0.0
        %1928 = vadd.xlane.f32.xlu0 %v1927
        %v1929 = vpop.xlane.xlu0 %1928
        %v1930 = vsel %vm1623, %v1898, 0.0
        %1931 = vadd.xlane.f32.xlu0 %v1930
        %v1932 = vpop.xlane.xlu0 %1931
        %v1933 = vsel %vm1623, %v1899, 0.0
        %1934 = vadd.xlane.f32.xlu0 %v1933
        %v1935 = vpop.xlane.xlu0 %1934
        %v1936 = vsel %vm1623, %v1900, 0.0
        %1937 = vadd.xlane.f32.xlu0 %v1936
        %v1938 = vpop.xlane.xlu0 %1937
        %v1939 = vsel %vm1623, %v1901, 0.0
        %1940 = vadd.xlane.f32.xlu0 %v1939
        %v1941 = vpop.xlane.xlu0 %1940
        %v1942 = vsel %vm1623, %v1902, 0.0
        %1943 = vadd.xlane.f32.xlu0 %v1942
        %v1944 = vpop.xlane.xlu0 %1943
        %v1945 = vsel %vm1623, %v1903, 0.0
        %1946 = vadd.xlane.f32.xlu0 %v1945
        %v1947 = vpop.xlane.xlu0 %1946
        %v1948 = vsel %vm1623, %v1904, 0.0
        %1949 = vadd.xlane.f32.xlu0 %v1948
        %v1950 = vpop.xlane.xlu0 %1949
        %v1951 = vsel %vm1623, %v1905, 0.0
        %1952 = vadd.xlane.f32.xlu0 %v1951
        %v1953 = vpop.xlane.xlu0 %1952
        %v1954 = vmul.f32 %v1844, 0.015625
        %v1955 = vmul.f32 %v1847, 0.015625
        %v1956 = vmul.f32 %v1850, 0.015625
        %v1957 = vmul.f32 %v1853, 0.015625
        %v1958 = vmul.f32 %v1856, 0.015625
        %v1959 = vmul.f32 %v1859, 0.015625
        %v1960 = vmul.f32 %v1862, 0.015625
        %v1961 = vmul.f32 %v1865, 0.015625
        %v1962 = vmul.f32 %v1868, 0.015625
        %v1963 = vmul.f32 %v1871, 0.015625
        %v1964 = vmul.f32 %v1874, 0.015625
        %v1965 = vmul.f32 %v1877, 0.015625
        %v1966 = vmul.f32 %v1880, 0.015625
        %v1967 = vmul.f32 %v1883, 0.015625
        %v1968 = vmul.f32 %v1886, 0.015625
        %v1969 = vmul.f32 %v1889, 0.015625
        %v1970 = vmul.f32 %v1908, 0.015625
        %v1971 = vmul.f32 %v1911, 0.015625
        %v1972 = vmul.f32 %v1914, 0.015625
        %v1973 = vmul.f32 %v1917, 0.015625
        %v1974 = vmul.f32 %v1920, 0.015625
        %v1975 = vmul.f32 %v1923, 0.015625
        %v1976 = vmul.f32 %v1926, 0.015625
        %v1977 = vmul.f32 %v1929, 0.015625
        %v1978 = vmul.f32 %v1932, 0.015625
        %v1979 = vmul.f32 %v1935, 0.015625
        %v1980 = vmul.f32 %v1938, 0.015625
        %v1981 = vmul.f32 %v1941, 0.015625
        %v1982 = vmul.f32 %v1944, 0.015625
        %v1983 = vmul.f32 %v1947, 0.015625
        %v1984 = vmul.f32 %v1950, 0.015625
        %v1985 = vmul.f32 %v1953, 0.015625
        %v1986 = vmul.f32 %v1954, %v1954
        %v1987 = vmul.f32 %v1955, %v1955
        %v1988 = vmul.f32 %v1956, %v1956
        %v1989 = vmul.f32 %v1957, %v1957
        %v1990 = vmul.f32 %v1958, %v1958
        %v1991 = vmul.f32 %v1959, %v1959
        %v1992 = vmul.f32 %v1960, %v1960
        %v1993 = vmul.f32 %v1961, %v1961
        %v1994 = vmul.f32 %v1962, %v1962
        %v1995 = vmul.f32 %v1963, %v1963
        %v1996 = vmul.f32 %v1964, %v1964
        %v1997 = vmul.f32 %v1965, %v1965
        %v1998 = vmul.f32 %v1966, %v1966
        %v1999 = vmul.f32 %v1967, %v1967
        %v2000 = vmul.f32 %v1968, %v1968
        %v2001 = vmul.f32 %v1969, %v1969
        %v2002 = vsub.f32 %v1970, %v1986
        %v2003 = vsub.f32 %v1971, %v1987
        %v2004 = vsub.f32 %v1972, %v1988
        %v2005 = vsub.f32 %v1973, %v1989
        %v2006 = vsub.f32 %v1974, %v1990
        %v2007 = vsub.f32 %v1975, %v1991
        %v2008 = vsub.f32 %v1976, %v1992
        %v2009 = vsub.f32 %v1977, %v1993
        %v2010 = vsub.f32 %v1978, %v1994
        %v2011 = vsub.f32 %v1979, %v1995
        %v2012 = vsub.f32 %v1980, %v1996
        %v2013 = vsub.f32 %v1981, %v1997
        %v2014 = vsub.f32 %v1982, %v1998
        %v2015 = vsub.f32 %v1983, %v1999
        %v2016 = vsub.f32 %v1984, %v2000
        %v2017 = vsub.f32 %v1985, %v2001
        %v2018 = vmax.f32 %v2002, 0.0
        %v2019 = vmax.f32 %v2003, 0.0
        %v2020 = vmax.f32 %v2004, 0.0
        %v2021 = vmax.f32 %v2005, 0.0
        %v2022 = vmax.f32 %v2006, 0.0
        %v2023 = vmax.f32 %v2007, 0.0
        %v2024 = vmax.f32 %v2008, 0.0
        %v2025 = vmax.f32 %v2009, 0.0
        %v2026 = vmax.f32 %v2010, 0.0
        %v2027 = vmax.f32 %v2011, 0.0
        %v2028 = vmax.f32 %v2012, 0.0
        %v2029 = vmax.f32 %v2013, 0.0
        %v2030 = vmax.f32 %v2014, 0.0
        %v2031 = vmax.f32 %v2015, 0.0
        %v2032 = vmax.f32 %v2016, 0.0
        %v2033 = vmax.f32 %v2017, 0.0
        %v2034 = vadd.f32 %v2018, 1e-05
        %v2035 = vadd.f32 %v2019, 1e-05
        %v2036 = vadd.f32 %v2020, 1e-05
        %v2037 = vadd.f32 %v2021, 1e-05
        %v2038 = vadd.f32 %v2022, 1e-05
        %v2039 = vadd.f32 %v2023, 1e-05
        %v2040 = vadd.f32 %v2024, 1e-05
        %v2041 = vadd.f32 %v2025, 1e-05
        %v2042 = vadd.f32 %v2026, 1e-05
        %v2043 = vadd.f32 %v2027, 1e-05
        %v2044 = vadd.f32 %v2028, 1e-05
        %v2045 = vadd.f32 %v2029, 1e-05
        %v2046 = vadd.f32 %v2030, 1e-05
        %v2047 = vadd.f32 %v2031, 1e-05
        %v2048 = vadd.f32 %v2032, 1e-05
        %v2049 = vadd.f32 %v2033, 1e-05
        %v2050 = vrsqrt.pop %v2034
        %v2051 = vrsqrt.pop %v2035
        %v2052 = vrsqrt.pop %v2036
        %v2053 = vrsqrt.pop %v2037
        %v2054 = vrsqrt.pop %v2038
        %v2055 = vrsqrt.pop %v2039
        %v2056 = vrsqrt.pop %v2040
        %v2057 = vrsqrt.pop %v2041
        %v2058 = vrsqrt.pop %v2042
        %v2059 = vrsqrt.pop %v2043
        %v2060 = vrsqrt.pop %v2044
        %v2061 = vrsqrt.pop %v2045
        %v2062 = vrsqrt.pop %v2046
        %v2063 = vrsqrt.pop %v2047
        %v2064 = vrsqrt.pop %v2048
        %v2065 = vrsqrt.pop %v2049
        %v2066 = vld [vmem:[%s430] sm:$0xff]
        %v2067 = vld [vmem:[%s430 + $0x8] sm:$0xff]
        %v2068 = vld [vmem:[%s430 + $0x10] sm:$0xff]
        %v2069 = vld [vmem:[%s430 + $0x18] sm:$0xff]
        %v2070 = vld [vmem:[%s430 + $0x20] sm:$0xff]
        %v2071 = vld [vmem:[%s430 + $0x28] sm:$0xff]
        %v2072 = vld [vmem:[%s430 + $0x30] sm:$0xff]
        %v2073 = vld [vmem:[%s430 + $0x38] sm:$0xff]
        %v2074 = vld [vmem:[%s430 + $0x40] sm:$0xff]
        %v2075 = vld [vmem:[%s430 + $0x48] sm:$0xff]
        %v2076 = vld [vmem:[%s430 + $0x50] sm:$0xff]
        %v2077 = vld [vmem:[%s430 + $0x58] sm:$0xff]
        %v2078 = vld [vmem:[%s430 + $0x60] sm:$0xff]
        %v2079 = vld [vmem:[%s430 + $0x68] sm:$0xff]
        %v2080 = vld [vmem:[%s430 + $0x70] sm:$0xff]
        %v2081 = vld [vmem:[%s430 + $0x78] sm:$0xff]
        %v2082 = vmul.f32 %v2050, %v2066
        %v2083 = vmul.f32 %v2051, %v2067
        %v2084 = vmul.f32 %v2052, %v2068
        %v2085 = vmul.f32 %v2053, %v2069
        %v2086 = vmul.f32 %v2054, %v2070
        %v2087 = vmul.f32 %v2055, %v2071
        %v2088 = vmul.f32 %v2056, %v2072
        %v2089 = vmul.f32 %v2057, %v2073
        %v2090 = vmul.f32 %v2058, %v2074
        %v2091 = vmul.f32 %v2059, %v2075
        %v2092 = vmul.f32 %v2060, %v2076
        %v2093 = vmul.f32 %v2061, %v2077
        %v2094 = vmul.f32 %v2062, %v2078
        %v2095 = vmul.f32 %v2063, %v2079
        %v2096 = vmul.f32 %v2064, %v2080
        %v2097 = vmul.f32 %v2065, %v2081
        %v2098 = vld [vmem:[%s448] sm:$0xff]
        %v2099 = vld [vmem:[%s448 + $0x8] sm:$0xff]
        %v2100 = vld [vmem:[%s448 + $0x10] sm:$0xff]
        %v2101 = vld [vmem:[%s448 + $0x18] sm:$0xff]
        %v2102 = vld [vmem:[%s448 + $0x20] sm:$0xff]
        %v2103 = vld [vmem:[%s448 + $0x28] sm:$0xff]
        %v2104 = vld [vmem:[%s448 + $0x30] sm:$0xff]
        %v2105 = vld [vmem:[%s448 + $0x38] sm:$0xff]
        %v2106 = vld [vmem:[%s448 + $0x40] sm:$0xff]
        %v2107 = vld [vmem:[%s448 + $0x48] sm:$0xff]
        %v2108 = vld [vmem:[%s448 + $0x50] sm:$0xff]
        %v2109 = vld [vmem:[%s448 + $0x58] sm:$0xff]
        %v2110 = vld [vmem:[%s448 + $0x60] sm:$0xff]
        %v2111 = vld [vmem:[%s448 + $0x68] sm:$0xff]
        %v2112 = vld [vmem:[%s448 + $0x70] sm:$0xff]
        %v2113 = vld [vmem:[%s448 + $0x78] sm:$0xff]
        %v2114 = vmul.f32 %v1954, %v2082
        %v2115 = vmul.f32 %v1955, %v2083
        %v2116 = vmul.f32 %v1956, %v2084
        %v2117 = vmul.f32 %v1957, %v2085
        %v2118 = vmul.f32 %v1958, %v2086
        %v2119 = vmul.f32 %v1959, %v2087
        %v2120 = vmul.f32 %v1960, %v2088
        %v2121 = vmul.f32 %v1961, %v2089
        %v2122 = vmul.f32 %v1962, %v2090
        %v2123 = vmul.f32 %v1963, %v2091
        %v2124 = vmul.f32 %v1964, %v2092
        %v2125 = vmul.f32 %v1965, %v2093
        %v2126 = vmul.f32 %v1966, %v2094
        %v2127 = vmul.f32 %v1967, %v2095
        %v2128 = vmul.f32 %v1968, %v2096
        %v2129 = vmul.f32 %v1969, %v2097
        %v2130 = vsub.f32 %v2098, %v2114
        %v2131 = vsub.f32 %v2099, %v2115
        %v2132 = vsub.f32 %v2100, %v2116
        %v2133 = vsub.f32 %v2101, %v2117
        %v2134 = vsub.f32 %v2102, %v2118
        %v2135 = vsub.f32 %v2103, %v2119
        %v2136 = vsub.f32 %v2104, %v2120
        %v2137 = vsub.f32 %v2105, %v2121
        %v2138 = vsub.f32 %v2106, %v2122
        %v2139 = vsub.f32 %v2107, %v2123
        %v2140 = vsub.f32 %v2108, %v2124
        %v2141 = vsub.f32 %v2109, %v2125
        %v2142 = vsub.f32 %v2110, %v2126
        %v2143 = vsub.f32 %v2111, %v2127
        %v2144 = vsub.f32 %v2112, %v2128
        %v2145 = vsub.f32 %v2113, %v2129
        %v2146 = vld [vmem:[%s466] sm:$0xff]
        %v2147 = vld [vmem:[%s466 + $0x8] sm:$0xff]
        %v2148 = vld [vmem:[%s466 + $0x10] sm:$0xff]
        %v2149 = vld [vmem:[%s466 + $0x18] sm:$0xff]
        %v2150 = vld [vmem:[%s466 + $0x20] sm:$0xff]
        %v2151 = vld [vmem:[%s466 + $0x28] sm:$0xff]
        %v2152 = vld [vmem:[%s466 + $0x30] sm:$0xff]
        %v2153 = vld [vmem:[%s466 + $0x38] sm:$0xff]
        %v2154 = vld [vmem:[%s466 + $0x40] sm:$0xff]
        %v2155 = vld [vmem:[%s466 + $0x48] sm:$0xff]
        %v2156 = vld [vmem:[%s466 + $0x50] sm:$0xff]
        %v2157 = vld [vmem:[%s466 + $0x58] sm:$0xff]
        %v2158 = vld [vmem:[%s466 + $0x60] sm:$0xff]
        %v2159 = vld [vmem:[%s466 + $0x68] sm:$0xff]
        %v2160 = vld [vmem:[%s466 + $0x70] sm:$0xff]
        %v2161 = vld [vmem:[%s466 + $0x78] sm:$0xff]
        %2163 = vset.pattern.permute.xlu0 0
        %2164 = vperm.xlu0 %2163, %v2082
        %v2165 = vpop.permute.xlu0 %2164
        %2168 = vset.pattern.permute.xlu0 0
        %2169 = vperm.xlu0 %2168, %v2083
        %v2170 = vpop.permute.xlu0 %2169
        %2173 = vset.pattern.permute.xlu0 0
        %2174 = vperm.xlu0 %2173, %v2084
        %v2175 = vpop.permute.xlu0 %2174
        %2178 = vset.pattern.permute.xlu0 0
        %2179 = vperm.xlu0 %2178, %v2085
        %v2180 = vpop.permute.xlu0 %2179
        %2183 = vset.pattern.permute.xlu0 0
        %2184 = vperm.xlu0 %2183, %v2086
        %v2185 = vpop.permute.xlu0 %2184
        %2188 = vset.pattern.permute.xlu0 0
        %2189 = vperm.xlu0 %2188, %v2087
        %v2190 = vpop.permute.xlu0 %2189
        %2193 = vset.pattern.permute.xlu0 0
        %2194 = vperm.xlu0 %2193, %v2088
        %v2195 = vpop.permute.xlu0 %2194
        %2198 = vset.pattern.permute.xlu0 0
        %2199 = vperm.xlu0 %2198, %v2089
        %v2200 = vpop.permute.xlu0 %2199
        %2203 = vset.pattern.permute.xlu0 0
        %2204 = vperm.xlu0 %2203, %v2090
        %v2205 = vpop.permute.xlu0 %2204
        %2208 = vset.pattern.permute.xlu0 0
        %2209 = vperm.xlu0 %2208, %v2091
        %v2210 = vpop.permute.xlu0 %2209
        %2213 = vset.pattern.permute.xlu0 0
        %2214 = vperm.xlu0 %2213, %v2092
        %v2215 = vpop.permute.xlu0 %2214
        %2218 = vset.pattern.permute.xlu0 0
        %2219 = vperm.xlu0 %2218, %v2093
        %v2220 = vpop.permute.xlu0 %2219
        %2223 = vset.pattern.permute.xlu0 0
        %2224 = vperm.xlu0 %2223, %v2094
        %v2225 = vpop.permute.xlu0 %2224
        %2228 = vset.pattern.permute.xlu0 0
        %2229 = vperm.xlu0 %2228, %v2095
        %v2230 = vpop.permute.xlu0 %2229
        %2233 = vset.pattern.permute.xlu0 0
        %2234 = vperm.xlu0 %2233, %v2096
        %v2235 = vpop.permute.xlu0 %2234
        %2238 = vset.pattern.permute.xlu0 0
        %2239 = vperm.xlu0 %2238, %v2097
        %v2240 = vpop.permute.xlu0 %2239
        %v2242 = vmul.f32 %v1780, %v2165
        %v2243 = vmul.f32 %v1783, %v2170
        %v2244 = vmul.f32 %v1788, %v2175
        %v2245 = vmul.f32 %v1791, %v2180
        %v2246 = vmul.f32 %v1796, %v2185
        %v2247 = vmul.f32 %v1799, %v2190
        %v2248 = vmul.f32 %v1804, %v2195
        %v2249 = vmul.f32 %v1807, %v2200
        %v2250 = vmul.f32 %v1812, %v2205
        %v2251 = vmul.f32 %v1815, %v2210
        %v2252 = vmul.f32 %v1820, %v2215
        %v2253 = vmul.f32 %v1823, %v2220
        %v2254 = vmul.f32 %v1828, %v2225
        %v2255 = vmul.f32 %v1831, %v2230
        %v2256 = vmul.f32 %v1836, %v2235
        %v2257 = vmul.f32 %v1839, %v2240
        %2259 = vset.pattern.permute.xlu0 0
        %2260 = vperm.xlu0 %2259, %v2130
        %v2261 = vpop.permute.xlu0 %2260
        %2264 = vset.pattern.permute.xlu0 0
        %2265 = vperm.xlu0 %2264, %v2131
        %v2266 = vpop.permute.xlu0 %2265
        %2269 = vset.pattern.permute.xlu0 0
        %2270 = vperm.xlu0 %2269, %v2132
        %v2271 = vpop.permute.xlu0 %2270
        %2274 = vset.pattern.permute.xlu0 0
        %2275 = vperm.xlu0 %2274, %v2133
        %v2276 = vpop.permute.xlu0 %2275
        %2279 = vset.pattern.permute.xlu0 0
        %2280 = vperm.xlu0 %2279, %v2134
        %v2281 = vpop.permute.xlu0 %2280
        %2284 = vset.pattern.permute.xlu0 0
        %2285 = vperm.xlu0 %2284, %v2135
        %v2286 = vpop.permute.xlu0 %2285
        %2289 = vset.pattern.permute.xlu0 0
        %2290 = vperm.xlu0 %2289, %v2136
        %v2291 = vpop.permute.xlu0 %2290
        %2294 = vset.pattern.permute.xlu0 0
        %2295 = vperm.xlu0 %2294, %v2137
        %v2296 = vpop.permute.xlu0 %2295
        %2299 = vset.pattern.permute.xlu0 0
        %2300 = vperm.xlu0 %2299, %v2138
        %v2301 = vpop.permute.xlu0 %2300
        %2304 = vset.pattern.permute.xlu0 0
        %2305 = vperm.xlu0 %2304, %v2139
        %v2306 = vpop.permute.xlu0 %2305
        %2309 = vset.pattern.permute.xlu0 0
        %2310 = vperm.xlu0 %2309, %v2140
        %v2311 = vpop.permute.xlu0 %2310
        %2314 = vset.pattern.permute.xlu0 0
        %2315 = vperm.xlu0 %2314, %v2141
        %v2316 = vpop.permute.xlu0 %2315
        %2319 = vset.pattern.permute.xlu0 0
        %2320 = vperm.xlu0 %2319, %v2142
        %v2321 = vpop.permute.xlu0 %2320
        %2324 = vset.pattern.permute.xlu0 0
        %2325 = vperm.xlu0 %2324, %v2143
        %v2326 = vpop.permute.xlu0 %2325
        %2329 = vset.pattern.permute.xlu0 0
        %2330 = vperm.xlu0 %2329, %v2144
        %v2331 = vpop.permute.xlu0 %2330
        %2334 = vset.pattern.permute.xlu0 0
        %2335 = vperm.xlu0 %2334, %v2145
        %v2336 = vpop.permute.xlu0 %2335
        %v2338 = vadd.f32 %v2242, %v2261
        %v2339 = vadd.f32 %v2243, %v2266
        %v2340 = vadd.f32 %v2244, %v2271
        %v2341 = vadd.f32 %v2245, %v2276
        %v2342 = vadd.f32 %v2246, %v2281
        %v2343 = vadd.f32 %v2247, %v2286
        %v2344 = vadd.f32 %v2248, %v2291
        %v2345 = vadd.f32 %v2249, %v2296
        %v2346 = vadd.f32 %v2250, %v2301
        %v2347 = vadd.f32 %v2251, %v2306
        %v2348 = vadd.f32 %v2252, %v2311
        %v2349 = vadd.f32 %v2253, %v2316
        %v2350 = vadd.f32 %v2254, %v2321
        %v2351 = vadd.f32 %v2255, %v2326
        %v2352 = vadd.f32 %v2256, %v2331
        %v2353 = vadd.f32 %v2257, %v2336
        %v2354 = vadd.f32 %v2146, %v2338
        %v2355 = vadd.f32 %v2147, %v2339
        %v2356 = vadd.f32 %v2148, %v2340
        %v2357 = vadd.f32 %v2149, %v2341
        %v2358 = vadd.f32 %v2150, %v2342
        %v2359 = vadd.f32 %v2151, %v2343
        %v2360 = vadd.f32 %v2152, %v2344
        %v2361 = vadd.f32 %v2153, %v2345
        %v2362 = vadd.f32 %v2154, %v2346
        %v2363 = vadd.f32 %v2155, %v2347
        %v2364 = vadd.f32 %v2156, %v2348
        %v2365 = vadd.f32 %v2157, %v2349
        %v2366 = vadd.f32 %v2158, %v2350
        %v2367 = vadd.f32 %v2159, %v2351
        %v2368 = vadd.f32 %v2160, %v2352
        %v2369 = vadd.f32 %v2161, %v2353
        %2370 = vst.msk [vmem:[%s398] sm:$0xff] %vm1623, %v2354
        %2371 = vst.msk [vmem:[%s398 + $0x8] sm:$0xff] %vm1623, %v2355
        %2372 = vst.msk [vmem:[%s398 + $0x10] sm:$0xff] %vm1623, %v2356
        %2373 = vst.msk [vmem:[%s398 + $0x18] sm:$0xff] %vm1623, %v2357
        %2374 = vst.msk [vmem:[%s398 + $0x20] sm:$0xff] %vm1623, %v2358
        %2375 = vst.msk [vmem:[%s398 + $0x28] sm:$0xff] %vm1623, %v2359
        %2376 = vst.msk [vmem:[%s398 + $0x30] sm:$0xff] %vm1623, %v2360
        %2377 = vst.msk [vmem:[%s398 + $0x38] sm:$0xff] %vm1623, %v2361
        %2378 = vst.msk [vmem:[%s398 + $0x40] sm:$0xff] %vm1623, %v2362
        %2379 = vst.msk [vmem:[%s398 + $0x48] sm:$0xff] %vm1623, %v2363
        %2380 = vst.msk [vmem:[%s398 + $0x50] sm:$0xff] %vm1623, %v2364
        %2381 = vst.msk [vmem:[%s398 + $0x58] sm:$0xff] %vm1623, %v2365
        %2382 = vst.msk [vmem:[%s398 + $0x60] sm:$0xff] %vm1623, %v2366
        %2383 = vst.msk [vmem:[%s398 + $0x68] sm:$0xff] %vm1623, %v2367
        %2384 = vst.msk [vmem:[%s398 + $0x70] sm:$0xff] %vm1623, %v2368
        %2385 = vst.msk [vmem:[%s398 + $0x78] sm:$0xff] %vm1623, %v2369
        %s2386 = sand.u32 %s203, 1
        %s2387 = sand.u32 %s203, 1
        %s2388 = smul.addr %s2387, 128
        %s2389 = scalar_lea.vmem [#allocation3], %s2388
        // Predicated region
        $region49: #{tpu_custom_call.1} parent=43 // pred_check
          %p2390 = pneg %p213
        $region50: #{tpu_custom_call.1} parent=43 // pred_check_branch
          %2392 = sbr.rel (%p2390) target = $region52
        $region51: #{tpu_custom_call.1} parent=43 // pred_region
          %s2393 = smul.u32 %s21, 2
          %s2394 = sadd.s32 %s2393, %s22
          %s2395 = smul.u32 16, %s2394
          %s2396 = ssub.s32 56, %s2395
          %p2397 = scmp.lt.s32.totalorder %s2396, 16
          %s2398 = scalar_select %p2397, %s2396, 16
          %s2399 = smul.u32 128, %s2398
          %p2400 = scmp.ne.s32.totalorder 0, %s2399
          %s2401 = smul.addr %s2395, 8
          %s2402 = scalar_lea.vmem %s6, %s2401
          // Predicated region
          $region53: #{tpu_custom_call.1} parent=51 // pred_check
            %p2403 = pneg %p2400
          $region54: #{tpu_custom_call.1} parent=51 // pred_check_branch
            %2405 = sbr.rel (%p2403) target = $region56
          $region55: #{tpu_custom_call.1} parent=51 // pred_region
            // Predicated region
            $region57: #{tpu_custom_call.1} parent=55 // pred_check
              _
            $region58: #{tpu_custom_call.1} parent=55 // pred_check_branch
              %2407 = sbr.rel (0) target = $region60
            $region59: #{tpu_custom_call.1} parent=55 // pred_region
              // Predicated region
              $region79: #{tpu_custom_call.1} parent=59 // pred_check
                _
              $region80: #{tpu_custom_call.1} parent=59 // pred_check_branch
                %2487 = sbr.rel (0) target = $region82
              $region81: #{tpu_custom_call.1} parent=59 // pred_region
                %s2488 = sshrl.u32 %s2398, 4
                // While loop
                $region83: #{tpu_custom_call.1} parent=81 // loop_pre_header
                  _
                $region84: #{tpu_custom_call.1} parent=81 // loop_header
                  %s2490 = sphi 0, %s2492
                  %p2491 = scmp.ge.s32.totalorder %s2490, %s2488
                  %s2495 = sphi 0, %s2532
                  %s2496 = sphi %s2389, %s2535
                  %s2497 = sphi %s2402, %s2536
                $region85: #{tpu_custom_call.1} parent=81 // loop_header_branch
                  %2494 = sbr.rel (%p2491) target = $region89
                $region86: #{tpu_custom_call.1} parent=81 // loop_body
                  %v2498 = vld [vmem:[%s2496] sm:$0xff]
                  %2499 = vst [vmem:[%s2497] sm:$0xff] %v2498
                  %v2500 = vld [vmem:[%s2496 + $0x8] sm:$0xff]
                  %2501 = vst [vmem:[%s2497 + $0x8] sm:$0xff] %v2500
                  %v2502 = vld [vmem:[%s2496 + $0x10] sm:$0xff]
                  %2503 = vst [vmem:[%s2497 + $0x10] sm:$0xff] %v2502
                  %v2504 = vld [vmem:[%s2496 + $0x18] sm:$0xff]
                  %2505 = vst [vmem:[%s2497 + $0x18] sm:$0xff] %v2504
                  %v2506 = vld [vmem:[%s2496 + $0x20] sm:$0xff]
                  %2507 = vst [vmem:[%s2497 + $0x20] sm:$0xff] %v2506
                  %v2508 = vld [vmem:[%s2496 + $0x28] sm:$0xff]
                  %2509 = vst [vmem:[%s2497 + $0x28] sm:$0xff] %v2508
                  %v2510 = vld [vmem:[%s2496 + $0x30] sm:$0xff]
                  %2511 = vst [vmem:[%s2497 + $0x30] sm:$0xff] %v2510
                  %v2512 = vld [vmem:[%s2496 + $0x38] sm:$0xff]
                  %2513 = vst [vmem:[%s2497 + $0x38] sm:$0xff] %v2512
                  %v2514 = vld [vmem:[%s2496 + $0x40] sm:$0xff]
                  %2515 = vst [vmem:[%s2497 + $0x40] sm:$0xff] %v2514
                  %v2516 = vld [vmem:[%s2496 + $0x48] sm:$0xff]
                  %2517 = vst [vmem:[%s2497 + $0x48] sm:$0xff] %v2516
                  %v2518 = vld [vmem:[%s2496 + $0x50] sm:$0xff]
                  %2519 = vst [vmem:[%s2497 + $0x50] sm:$0xff] %v2518
                  %v2520 = vld [vmem:[%s2496 + $0x58] sm:$0xff]
                  %2521 = vst [vmem:[%s2497 + $0x58] sm:$0xff] %v2520
                  %v2522 = vld [vmem:[%s2496 + $0x60] sm:$0xff]
                  %2523 = vst [vmem:[%s2497 + $0x60] sm:$0xff] %v2522
                  %v2524 = vld [vmem:[%s2496 + $0x68] sm:$0xff]
                  %2525 = vst [vmem:[%s2497 + $0x68] sm:$0xff] %v2524
                  %v2526 = vld [vmem:[%s2496 + $0x70] sm:$0xff]
                  %2527 = vst [vmem:[%s2497 + $0x70] sm:$0xff] %v2526
                  %v2528 = vld [vmem:[%s2496 + $0x78] sm:$0xff]
                  %2529 = vst [vmem:[%s2497 + $0x78] sm:$0xff] %v2528
                  %s2530 = sadd.s32 1, %s2495
                  %p2531 = scmp.ge.s32.totalorder %s2530, %s2488
                  %s2532 = scalar_select %p2531, 0, %s2530
                  %s2533 = smul.u32 %s2532, 128
                  %s2534 = smul.u32 %s2532, 128
                  %s2535 = scalar_lea.vmem %s2389, %s2533 [#allocation3]
                  %s2536 = scalar_lea.vmem %s2402, %s2534
                $region87: #{tpu_custom_call.1} parent=81 // loop_footer
                  %s2492 = sadd.s32 %s2490, 1
                $region88: #{tpu_custom_call.1} parent=81 // loop_footer_branch
                  %2489 = sbr.rel target = $region84
                $region89: #{tpu_custom_call.1} parent=81 // loop_exit
                  _
                %s2537 = sshrl.u32 %s2398, 4
                %s2538 = sand.u32 %s2398, 15
                %s2539 = smul.u32 %s2537, 16
                %s2540 = smul.u32 8, %s2539
                %s2541 = scalar_lea.vmem %s2389, %s2540 [#allocation3]
                %s2542 = smul.u32 8, %s2539
                %s2543 = scalar_lea.vmem %s2402, %s2542
                // While loop
                $region90: #{tpu_custom_call.1} parent=81 // loop_pre_header
                  _
                $region91: #{tpu_custom_call.1} parent=81 // loop_header
                  %s2545 = sphi 0, %s2547
                  %p2546 = scmp.ge.s32.totalorder %s2545, %s2538
                  %s2550 = sphi 0, %s2557
                  %s2551 = sphi %s2541, %s2560
                  %s2552 = sphi %s2543, %s2561
                $region92: #{tpu_custom_call.1} parent=81 // loop_header_branch
                  %2549 = sbr.rel (%p2546) target = $region96
                $region93: #{tpu_custom_call.1} parent=81 // loop_body
                  %v2553 = vld [vmem:[%s2551] sm:$0xff]
                  %2554 = vst [vmem:[%s2552] sm:$0xff] %v2553
                  %s2555 = sadd.s32 1, %s2550
                  %p2556 = scmp.ge.s32.totalorder %s2555, %s2538
                  %s2557 = scalar_select %p2556, 0, %s2555
                  %s2558 = smul.u32 %s2557, 8
                  %s2559 = smul.u32 %s2557, 8
                  %s2560 = scalar_lea.vmem %s2541, %s2558 [#allocation3]
                  %s2561 = scalar_lea.vmem %s2543, %s2559
                $region94: #{tpu_custom_call.1} parent=81 // loop_footer
                  %s2547 = sadd.s32 %s2545, 1
                $region95: #{tpu_custom_call.1} parent=81 // loop_footer_branch
                  %2544 = sbr.rel target = $region91
                $region96: #{tpu_custom_call.1} parent=81 // loop_exit
                  _
              $region82: #{tpu_custom_call.1} parent=59 // pred_fallthru
                _
              // Predicated region
              $region97: #{tpu_custom_call.1} parent=59 // pred_check
                _
              $region98: #{tpu_custom_call.1} parent=59 // pred_check_branch
                %2563 = sbr.rel target = $region100
              $region99: #{tpu_custom_call.1} parent=59 // pred_region
                _
              $region100: #{tpu_custom_call.1} parent=59 // pred_fallthru
                _
            $region60: #{tpu_custom_call.1} parent=55 // pred_fallthru
              _
            // Predicated region
            $region61: #{tpu_custom_call.1} parent=55 // pred_check
              _
            $region62: #{tpu_custom_call.1} parent=55 // pred_check_branch
              %2409 = sbr.rel target = $region64
            $region63: #{tpu_custom_call.1} parent=55 // pred_region
              %s2411 = ssub.s32 256, 1
              %s2412 = sshrl.u32 %s2398, 4
              // While loop
              $region65: #{tpu_custom_call.1} parent=63 // loop_pre_header
                _
              $region66: #{tpu_custom_call.1} parent=63 // loop_header
                %s2414 = sphi 0, %s2416
                %p2415 = scmp.ge.s32.totalorder %s2414, %s2412
                %s2419 = sphi 0, %s2456
                %s2420 = sphi %s2389, %s2459
                %s2421 = sphi %s2402, %s2460
              $region67: #{tpu_custom_call.1} parent=63 // loop_header_branch
                %2418 = sbr.rel (%p2415) target = $region71
              $region68: #{tpu_custom_call.1} parent=63 // loop_body
                %v2422 = vld [vmem:[%s2420] sm:%s2411]
                %2423 = vst [vmem:[%s2421] sm:%s2411] %v2422
                %v2424 = vld [vmem:[%s2420 + $0x8] sm:%s2411]
                %2425 = vst [vmem:[%s2421 + $0x8] sm:%s2411] %v2424
                %v2426 = vld [vmem:[%s2420 + $0x10] sm:%s2411]
                %2427 = vst [vmem:[%s2421 + $0x10] sm:%s2411] %v2426
                %v2428 = vld [vmem:[%s2420 + $0x18] sm:%s2411]
                %2429 = vst [vmem:[%s2421 + $0x18] sm:%s2411] %v2428
                %v2430 = vld [vmem:[%s2420 + $0x20] sm:%s2411]
                %2431 = vst [vmem:[%s2421 + $0x20] sm:%s2411] %v2430
                %v2432 = vld [vmem:[%s2420 + $0x28] sm:%s2411]
                %2433 = vst [vmem:[%s2421 + $0x28] sm:%s2411] %v2432
                %v2434 = vld [vmem:[%s2420 + $0x30] sm:%s2411]
                %2435 = vst [vmem:[%s2421 + $0x30] sm:%s2411] %v2434
                %v2436 = vld [vmem:[%s2420 + $0x38] sm:%s2411]
                %2437 = vst [vmem:[%s2421 + $0x38] sm:%s2411] %v2436
                %v2438 = vld [vmem:[%s2420 + $0x40] sm:%s2411]
                %2439 = vst [vmem:[%s2421 + $0x40] sm:%s2411] %v2438
                %v2440 = vld [vmem:[%s2420 + $0x48] sm:%s2411]
                %2441 = vst [vmem:[%s2421 + $0x48] sm:%s2411] %v2440
                %v2442 = vld [vmem:[%s2420 + $0x50] sm:%s2411]
                %2443 = vst [vmem:[%s2421 + $0x50] sm:%s2411] %v2442
                %v2444 = vld [vmem:[%s2420 + $0x58] sm:%s2411]
                %2445 = vst [vmem:[%s2421 + $0x58] sm:%s2411] %v2444
                %v2446 = vld [vmem:[%s2420 + $0x60] sm:%s2411]
                %2447 = vst [vmem:[%s2421 + $0x60] sm:%s2411] %v2446
                %v2448 = vld [vmem:[%s2420 + $0x68] sm:%s2411]
                %2449 = vst [vmem:[%s2421 + $0x68] sm:%s2411] %v2448
                %v2450 = vld [vmem:[%s2420 + $0x70] sm:%s2411]
                %2451 = vst [vmem:[%s2421 + $0x70] sm:%s2411] %v2450
                %v2452 = vld [vmem:[%s2420 + $0x78] sm:%s2411]
                %2453 = vst [vmem:[%s2421 + $0x78] sm:%s2411] %v2452
                %s2454 = sadd.s32 1, %s2419
                %p2455 = scmp.ge.s32.totalorder %s2454, %s2412
                %s2456 = scalar_select %p2455, 0, %s2454
                %s2457 = smul.u32 %s2456, 128
                %s2458 = smul.u32 %s2456, 128
                %s2459 = scalar_lea.vmem %s2389, %s2457 [#allocation3]
                %s2460 = scalar_lea.vmem %s2402, %s2458
              $region69: #{tpu_custom_call.1} parent=63 // loop_footer
                %s2416 = sadd.s32 %s2414, 1
              $region70: #{tpu_custom_call.1} parent=63 // loop_footer_branch
                %2413 = sbr.rel target = $region66
              $region71: #{tpu_custom_call.1} parent=63 // loop_exit
                _
              %s2461 = sshrl.u32 %s2398, 4
              %s2462 = sand.u32 %s2398, 15
              %s2463 = smul.u32 %s2461, 16
              %s2464 = smul.u32 8, %s2463
              %s2465 = scalar_lea.vmem %s2389, %s2464 [#allocation3]
              %s2466 = smul.u32 8, %s2463
              %s2467 = scalar_lea.vmem %s2402, %s2466
              // While loop
              $region72: #{tpu_custom_call.1} parent=63 // loop_pre_header
                _
              $region73: #{tpu_custom_call.1} parent=63 // loop_header
                %s2469 = sphi 0, %s2471
                %p2470 = scmp.ge.s32.totalorder %s2469, %s2462
                %s2474 = sphi 0, %s2481
                %s2475 = sphi %s2465, %s2484
                %s2476 = sphi %s2467, %s2485
              $region74: #{tpu_custom_call.1} parent=63 // loop_header_branch
                %2473 = sbr.rel (%p2470) target = $region78
              $region75: #{tpu_custom_call.1} parent=63 // loop_body
                %v2477 = vld [vmem:[%s2475] sm:%s2411]
                %2478 = vst [vmem:[%s2476] sm:%s2411] %v2477
                %s2479 = sadd.s32 1, %s2474
                %p2480 = scmp.ge.s32.totalorder %s2479, %s2462
                %s2481 = scalar_select %p2480, 0, %s2479
                %s2482 = smul.u32 %s2481, 8
                %s2483 = smul.u32 %s2481, 8
                %s2484 = scalar_lea.vmem %s2465, %s2482 [#allocation3]
                %s2485 = scalar_lea.vmem %s2467, %s2483
              $region76: #{tpu_custom_call.1} parent=63 // loop_footer
                %s2471 = sadd.s32 %s2469, 1
              $region77: #{tpu_custom_call.1} parent=63 // loop_footer_branch
                %2468 = sbr.rel target = $region73
              $region78: #{tpu_custom_call.1} parent=63 // loop_exit
                _
            $region64: #{tpu_custom_call.1} parent=55 // pred_fallthru
              _
          $region56: #{tpu_custom_call.1} parent=51 // pred_fallthru
            _
          %2564 = vnop
        $region52: #{tpu_custom_call.1} parent=43 // pred_fallthru
          _
      $region44: #{tpu_custom_call.1} parent=5 // pred_fallthru
        _
      %p2565 = scmp.le.s32.totalorder 2, %s12
      // Predicated region
      $region101: #{tpu_custom_call.1} parent=5 // pred_check
        %p2566 = pneg %p2565
      $region102: #{tpu_custom_call.1} parent=5 // pred_check_branch
        %2568 = sbr.rel (%p2566) target = $region104
      $region103: #{tpu_custom_call.1} parent=5 // pred_region
        %s2569 = ssub.s32 %s12, 2
        // Predicated region
        $region105: #{tpu_custom_call.1} parent=103 // pred_check
          %p2570 = pneg %p219
        $region106: #{tpu_custom_call.1} parent=103 // pred_check_branch
          %2572 = sbr.rel (%p2570) target = $region108
        $region107: #{tpu_custom_call.1} parent=103 // pred_region
          %s2573 = sand.u32 %s204, 1
          %s2574 = sand.u32 %s204, 1
          %s2575 = smul.addr %s2574, 128
          %s2576 = scalar_lea.vmem [#allocation3], %s2575
        $region108: #{tpu_custom_call.1} parent=103 // pred_fallthru
          _
      $region104: #{tpu_custom_call.1} parent=5 // pred_fallthru
        _
    $region6: #{tpu_custom_call.1} parent=1 // loop_footer
      %s16 = sadd.s32 1, %s12
    $region7: #{tpu_custom_call.1} parent=1 // loop_footer_branch
      %11 = sbr.rel target = $region3
    $region8: #{tpu_custom_call.1} parent=1 // loop_exit
      _

</llo_original>
